<compile_context>
chip_gen: v6e
topology: v6e:2x2x1
jax: 0.10.0
libtpu: 0.0.40
codegen_flags: <defaults>
</compile_context>

<pallas_src>
import functools

import jax
import jax.numpy as jnp
import numpy as np
from jax.experimental import pallas as pl
from jax.experimental.pallas import tpu as pltpu


# ----------------------------------------------------------------------------
# Fused kernel: one image per grid step, everything VMEM resident.
# Layouts: h1 / up are (8 rows = spatial row, 128 lanes = 16 channels x 8 cols).
# ----------------------------------------------------------------------------
def _fused_autoencoder_kernel(x_ref, rs_ref, vs_ref, b1_ref, reo_ref, peo_ref,
                              peot_ref, reot_ref, s1_ref, ma_ref, mb_ref,
                              b2_ref, o_ref):
    f32 = jnp.float32
    x_img = x_ref[0]                                     # (16, 16)

    # ---- conv1: Conv2d(1, 16, k=3, s=2, p=1) + ReLU -> h1 (8, 128) ----------
    # h1[oh, c*8+ow] = b1[c] + sum_kh sum_kw w1[c,kh,kw] * x[2oh-1+kh, 2ow-1+kw]
    acc = jnp.zeros((8, 128), f32)
    for kh in range(3):
        rows = jnp.dot(rs_ref[kh], x_img, preferred_element_type=f32)   # (8,16)
        acc = acc + jnp.dot(rows, vs_ref[kh], preferred_element_type=f32)
    h1 = jnp.maximum(acc + b1_ref[...], 0.0)             # (8, 128)

    # ---- MaxPool2d(2,2,return_indices) + MaxUnpool2d(2,2), fused ------------
    re_m = reo_ref[0]                                    # (4,8)  even rows
    ro_m = reo_ref[1]                                    # (4,8)  odd rows
    pe_m = peo_ref[0]                                    # (128,64) even cols
    po_m = peo_ref[1]                                    # (128,64) odd cols
    he = jnp.dot(re_m, h1, preferred_element_type=f32)   # (4,128) rows 2m
    ho = jnp.dot(ro_m, h1, preferred_element_type=f32)   # (4,128) rows 2m+1
    a = jnp.dot(he, pe_m, preferred_element_type=f32)    # (4,64) window (0,0)
    b = jnp.dot(he, po_m, preferred_element_type=f32)    # (0,1)
    c = jnp.dot(ho, pe_m, preferred_element_type=f32)    # (1,0)
    d = jnp.dot(ho, po_m, preferred_element_type=f32)    # (1,1)
    wmax = jnp.maximum(jnp.maximum(a, b), jnp.maximum(c, d))
    # PyTorch keeps the FIRST argmax in (kh,kw) scan order -> first-wins masks.
    ka = a == wmax
    kb = jnp.logical_and(b == wmax, jnp.logical_not(ka))
    kab = jnp.logical_or(ka, kb)
    kc = jnp.logical_and(c == wmax, jnp.logical_not(kab))
    kabc = jnp.logical_or(kab, kc)
    kd = jnp.logical_and(d == wmax, jnp.logical_not(kabc))
    zero = jnp.zeros_like(a)
    ua = jnp.where(ka, a, zero)
    ub = jnp.where(kb, b, zero)
    uc = jnp.where(kc, c, zero)
    ud = jnp.where(kd, d, zero)
    # Scatter the kept values back onto the 8x8 grid -> up (8,128).
    pe_t = peot_ref[0]                                   # (64,128)
    po_t = peot_ref[1]
    re_t = reot_ref[0]                                   # (8,4)
    ro_t = reot_ref[1]
    t_even = (jnp.dot(ua, pe_t, preferred_element_type=f32)
              + jnp.dot(ub, po_t, preferred_element_type=f32))        # (4,128)
    t_odd = (jnp.dot(uc, pe_t, preferred_element_type=f32)
             + jnp.dot(ud, po_t, preferred_element_type=f32))         # (4,128)
    up = (jnp.dot(re_t, t_even, preferred_element_type=f32)
          + jnp.dot(ro_t, t_odd, preferred_element_type=f32))         # (8,128)

    # ---- ConvTranspose2d(16, 1, k=3, s=2, p=1, op=1) + ReLU: 4-parity form --
    # y[2m+dh, 2p+dw] = sum_c (up[m, c, :] taps) -> columns = parity*8 + p.
    upsh = jnp.dot(s1_ref[...], up, preferred_element_type=f32)   # up[m+1], 0-fill
    y = (jnp.dot(up, ma_ref[...], preferred_element_type=f32)
         + jnp.dot(upsh, mb_ref[...], preferred_element_type=f32))    # (8,32)
    y = jnp.maximum(y + b2_ref[...], 0.0)
    o_ref[0] = y


# ----------------------------------------------------------------------------
# Constant 0/1 selection matrices (weight independent).
# ----------------------------------------------------------------------------
@functools.lru_cache(maxsize=None)
def _selection_constants():
    # conv1 row selector: RS[kh, oh, i] = 1 iff i == 2*oh - 1 + kh (padding=1).
    rs = np.zeros((3, 8, 16), np.float32)
    for kh in range(3):
        for oh in range(8):
            i = 2 * oh - 1 + kh
            if 0 <= i < 16:
                rs[kh, oh, i] = 1.0
    # conv1 column selector: SEL[kw, j, ow] = 1 iff j == 2*ow - 1 + kw.
    sel = np.zeros((3, 16, 8), np.float32)
    for kw in range(3):
        for ow in range(8):
            j = 2 * ow - 1 + kw
            if 0 <= j < 16:
                sel[kw, j, ow] = 1.0
    # Pool even/odd row and (per-channel-block) even/odd column selectors.
    reo = np.zeros((2, 4, 8), np.float32)
    for m in range(4):
        reo[0, m, 2 * m] = 1.0
        reo[1, m, 2 * m + 1] = 1.0
    peo = np.zeros((2, 128, 64), np.float32)
    for ch in range(16):
        for p in range(4):
            peo[0, ch * 8 + 2 * p, ch * 4 + p] = 1.0
            peo[1, ch * 8 + 2 * p + 1, ch * 4 + p] = 1.0
    peot = np.ascontiguousarray(np.transpose(peo, (0, 2, 1)))
    reot = np.ascontiguousarray(np.transpose(reo, (0, 2, 1)))
    # convT row shift: (S1 @ up)[m] = up[m+1], zero for m = 7 (ih=8 is OOB).
    s1 = np.zeros((8, 8), np.float32)
    for m in range(7):
        s1[m, m + 1] = 1.0
    return rs, sel, reo, peo, peot, reot, s1


def _weight_matrices(w1, b1, w2, b2, sel):
    """Fold conv weights into the kernel's contraction matrices."""
    # conv1: VS[kh, j, c*8+ow] = sum_kw w1[c,0,kh,kw] * (j == 2*ow-1+kw)
    vs = jnp.einsum("ckw,wjo->kjco", w1[:, 0], sel).reshape(3, 16, 128)
    b1row = jnp.repeat(b1.astype(jnp.float32), 8).reshape(1, 128)
    # convT 4-parity matrices. Output column = (2*dh+dw)*8 + p'.
    e0 = jnp.asarray(np.eye(8, dtype=np.float32))           # p == p'
    e1 = jnp.asarray(np.eye(8, k=-1, dtype=np.float32))     # p == p' + 1
    wt = w2[:, 0]                                            # (16, 3, 3)

    def blk(wvec, e):
        return jnp.einsum("c,pq->cpq", wvec, e)

    ma = jnp.stack([
        blk(wt[:, 1, 1], e0),                                # (even, even)
        blk(wt[:, 1, 0], e1) + blk(wt[:, 1, 2], e0),         # (even, odd)
        blk(wt[:, 2, 1], e0),                                # (odd,  even), ih=m
        blk(wt[:, 2, 0], e1) + blk(wt[:, 2, 2], e0),         # (odd,  odd),  ih=m
    ], axis=2).reshape(128, 32)
    zb = jnp.zeros((16, 8, 8), jnp.float32)
    mb = jnp.stack([
        zb,
        zb,
        blk(wt[:, 0, 1], e0),                                # (odd, even), ih=m+1
        blk(wt[:, 0, 0], e1) + blk(wt[:, 0, 2], e0),         # (odd, odd),  ih=m+1
    ], axis=2).reshape(128, 32)
    b2row = jnp.broadcast_to(b2.reshape(1, 1).astype(jnp.float32), (1, 32))
    return vs, b1row, ma, mb, b2row


# ----------------------------------------------------------------------------
# Forward pass wrapper (only weight prep + final NCHW reshape outside Pallas).
# ----------------------------------------------------------------------------
def stacked_conv_autoencoder_forward(x, params):
    """x: (N, 1, 16, 16) float32 -> (N, 1, 16, 16), same math as the nn.Module."""
    w1, b1, w2, b2 = params["w1"], params["b1"], params["w2"], params["b2"]
    assert x.shape[1:] == (1, 16, 16), x.shape
    n = x.shape[0]

    rs, sel, reo, peo, peot, reot, s1 = _selection_constants()
    vs, b1row, ma, mb, b2row = _weight_matrices(w1, b1, w2, b2, jnp.asarray(sel))
    x3 = x.reshape(n, 16, 16).astype(jnp.float32)

    def full(shape):
        return pl.BlockSpec(shape, lambda i, _s=shape: (0,) * len(_s))

    flops_per_img = 815_104            # sum of 2*M*N*K over the tiny matmuls
    bytes_per_img = 4 * (16 * 16 + 8 * 32 + 47_840)   # image + output + consts

    out = pl.pallas_call(
        _fused_autoencoder_kernel,
        out_shape=jax.ShapeDtypeStruct((n, 8, 32), jnp.float32),
        grid=(n,),
        in_specs=[
            pl.BlockSpec((1, 16, 16), lambda i: (i, 0, 0)),   # x (one image)
            full((3, 8, 16)),        # RS   conv1 row selectors
            full((3, 16, 128)),      # VS   conv1 col selectors x weights
            full((1, 128)),          # b1 broadcast row
            full((2, 4, 8)),         # RE / RO
            full((2, 128, 64)),      # PE / PO
            full((2, 64, 128)),      # PE^T / PO^T
            full((2, 8, 4)),         # RE^T / RO^T
            full((8, 8)),            # S1 row shift
            full((128, 32)),         # MA (convT taps, ih = m)
            full((128, 32)),         # MB (convT taps, ih = m+1)
            full((1, 32)),           # b2 broadcast row
        ],
        out_specs=pl.BlockSpec((1, 8, 32), lambda i: (i, 0, 0)),
        compiler_params=pltpu.CompilerParams(
            dimension_semantics=("parallel",)),
        cost_estimate=pl.CostEstimate(
            flops=flops_per_img * n,
            transcendentals=0,
            bytes_accessed=bytes_per_img * n),
    )(x3, jnp.asarray(rs), vs, b1row, jnp.asarray(reo), jnp.asarray(peo),
      jnp.asarray(peot), jnp.asarray(reot), jnp.asarray(s1), ma, mb, b2row)

    # (N, 8, 32): rows = m, cols = (dh, dw, p') -> pixel (2m+dh, 2p'+dw).
    y = jnp.transpose(out.reshape(n, 8, 2, 2, 8), (0, 1, 2, 4, 3))
    return y.reshape(n, 1, 16, 16)


# ----------------------------------------------------------------------------
# Pure-JAX reference (independent check of the Pallas implementation).
# ----------------------------------------------------------------------------
def reference_forward(x, params):
    w1, b1, w2, b2 = params["w1"], params["b1"], params["w2"], params["b2"]
    dn = ("NCHW", "OIHW", "NCHW")
    h = jax.lax.conv_general_dilated(x, w1, (2, 2), ((1, 1), (1, 1)),
                                     dimension_numbers=dn)
    h = jnp.maximum(h + b1.reshape(1, -1, 1, 1), 0.0)
    N, C, Ho, Wo = h.shape
    hw = (h.reshape(N, C, Ho // 2, 2, Wo // 2, 2)
           .transpose(0, 1, 2, 4, 3, 5)
           .reshape(N, C, Ho // 2, Wo // 2, 4))
    idx = jnp.argmax(hw, axis=-1)                    # first max wins, like PyTorch
    mask = jax.nn.one_hot(idx, 4, dtype=h.dtype)
    uw = hw * mask
    u = (uw.reshape(N, C, Ho // 2, Wo // 2, 2, 2)
           .transpose(0, 1, 2, 4, 3, 5)
           .reshape(N, C, Ho, Wo))
    w2c = jnp.transpose(w2, (1, 0, 2, 3))[:, :, ::-1, ::-1]
    y = jax.lax.conv_general_dilated(u, w2c, (1, 1), ((1, 2), (1, 2)),
                                     lhs_dilation=(2, 2), dimension_numbers=dn)
    return jnp.maximum(y + b2.reshape(1, -1, 1, 1), 0.0)


# ----------------------------------------------------------------------------
if __name__ == "__main__":
    key = jax.random.PRNGKey(0)
    k1, k2, k3, k4, k5 = jax.random.split(key, 5)
    # Deterministic synthetic parameters (shapes from the module's __init__).
    params = {
        "w1": jax.random.normal(k1, (16, 1, 3, 3), jnp.float32) * (1.0 / 3.0),
        "b1": jax.random.normal(k2, (16,), jnp.float32) * 0.1,
        "w2": jax.random.normal(k3, (16, 1, 3, 3), jnp.float32) * (1.0 / 12.0),
        "b2": jax.random.normal(k4, (1,), jnp.float32) * 0.1,
    }
    x = jax.random.normal(k5, (2, 1, 16, 16), jnp.float32)

    fwd = jax.jit(stacked_conv_autoencoder_forward)
    y = jax.block_until_ready(fwd(x, params))

    y_ref = jax.block_until_ready(reference_forward(x, params))
    assert y.shape == (2, 1, 16, 16), y.shape
    max_err = float(jnp.max(jnp.abs(y - y_ref)))
    assert np.isfinite(max_err) and max_err < 1e-2, f"max_err={max_err}"

    print("KERNEL_OK")
</pallas_src>

<mosaic_0001>
module attributes {stable_mosaic.version = 11 : i64} {
  func.func @_fused_autoencoder_kernel(%arg0: i32, %arg1: memref<1x16x16xf32, #tpu.memory_space<vmem>>, %arg2: memref<3x8x16xf32, #tpu.memory_space<vmem>>, %arg3: memref<3x16x128xf32, #tpu.memory_space<vmem>>, %arg4: memref<1x128xf32, #tpu.memory_space<vmem>>, %arg5: memref<2x4x8xf32, #tpu.memory_space<vmem>>, %arg6: memref<2x128x64xf32, #tpu.memory_space<vmem>>, %arg7: memref<2x64x128xf32, #tpu.memory_space<vmem>>, %arg8: memref<2x8x4xf32, #tpu.memory_space<vmem>>, %arg9: memref<8x8xf32, #tpu.memory_space<vmem>>, %arg10: memref<128x32xf32, #tpu.memory_space<vmem>>, %arg11: memref<128x32xf32, #tpu.memory_space<vmem>>, %arg12: memref<1x32xf32, #tpu.memory_space<vmem>>, %arg13: memref<1x8x32xf32, #tpu.memory_space<vmem>>) attributes {dimension_semantics = [#tpu.dimension_semantics<parallel>], iteration_bounds = array<i64: 2>, scalar_prefetch = 0 : i64, scratch_operands = 0 : i64, tpu.core_type = #tpu.core_type<tc>, window_params = [{transform_indices = @transform_0, window_bounds = array<i64: 1, 16, 16>}, {pipeline_mode = #tpu.pipeline_mode<synchronous>, transform_indices = @transform_1, window_bounds = array<i64: 3, 8, 16>}, {pipeline_mode = #tpu.pipeline_mode<synchronous>, transform_indices = @transform_2, window_bounds = array<i64: 3, 16, 128>}, {pipeline_mode = #tpu.pipeline_mode<synchronous>, transform_indices = @transform_3, window_bounds = array<i64: 1, 128>}, {pipeline_mode = #tpu.pipeline_mode<synchronous>, transform_indices = @transform_4, window_bounds = array<i64: 2, 4, 8>}, {pipeline_mode = #tpu.pipeline_mode<synchronous>, transform_indices = @transform_5, window_bounds = array<i64: 2, 128, 64>}, {pipeline_mode = #tpu.pipeline_mode<synchronous>, transform_indices = @transform_6, window_bounds = array<i64: 2, 64, 128>}, {pipeline_mode = #tpu.pipeline_mode<synchronous>, transform_indices = @transform_7, window_bounds = array<i64: 2, 8, 4>}, {pipeline_mode = #tpu.pipeline_mode<synchronous>, transform_indices = @transform_8, window_bounds = array<i64: 8, 8>}, {pipeline_mode = #tpu.pipeline_mode<synchronous>, transform_indices = @transform_9, window_bounds = array<i64: 128, 32>}, {pipeline_mode = #tpu.pipeline_mode<synchronous>, transform_indices = @transform_10, window_bounds = array<i64: 128, 32>}, {pipeline_mode = #tpu.pipeline_mode<synchronous>, transform_indices = @transform_11, window_bounds = array<i64: 1, 32>}, {transform_indices = @transform_12, window_bounds = array<i64: 1, 8, 32>}]} {
    %c0 = arith.constant 0 : index
    %c0_0 = arith.constant 0 : index
    %c0_1 = arith.constant 0 : index
    %0 = vector.load %arg1[%c0, %c0_0, %c0_1] : memref<1x16x16xf32, #tpu.memory_space<vmem>>, vector<1x16x16xf32>
    %1 = vector.shape_cast %0 : vector<1x16x16xf32> to vector<16x16xf32>
    %cst = arith.constant 0.000000e+00 : f32
    %2 = vector.broadcast %cst : f32 to vector<8x128xf32>
    %c0_2 = arith.constant 0 : index
    %c0_3 = arith.constant 0 : index
    %c0_4 = arith.constant 0 : index
    %3 = vector.load %arg2[%c0_2, %c0_3, %c0_4] : memref<3x8x16xf32, #tpu.memory_space<vmem>>, vector<1x8x16xf32>
    %4 = vector.shape_cast %3 : vector<1x8x16xf32> to vector<8x16xf32>
    %cst_5 = arith.constant dense<0.000000e+00> : vector<8x16xf32>
    %5 = tpu.matmul %4, %1, %cst_5 {dimension_numbers = #tpu.dot_dimension_numbers<[1], [0], [0], [1], [0, 0, 1, 1], [], []>} : vector<8x16xf32>, vector<16x16xf32>, vector<8x16xf32> -> vector<8x16xf32>
    %c0_6 = arith.constant 0 : index
    %c0_7 = arith.constant 0 : index
    %c0_8 = arith.constant 0 : index
    %6 = vector.load %arg3[%c0_6, %c0_7, %c0_8] : memref<3x16x128xf32, #tpu.memory_space<vmem>>, vector<1x16x128xf32>
    %7 = vector.shape_cast %6 : vector<1x16x128xf32> to vector<16x128xf32>
    %cst_9 = arith.constant dense<0.000000e+00> : vector<8x128xf32>
    %8 = tpu.matmul %5, %7, %cst_9 {dimension_numbers = #tpu.dot_dimension_numbers<[1], [0], [0], [1], [0, 0, 1, 1], [], []>} : vector<8x16xf32>, vector<16x128xf32>, vector<8x128xf32> -> vector<8x128xf32>
    %9 = arith.addf %2, %8 : vector<8x128xf32>
    %c1 = arith.constant 1 : index
    %c0_10 = arith.constant 0 : index
    %c0_11 = arith.constant 0 : index
    %10 = vector.load %arg2[%c1, %c0_10, %c0_11] : memref<3x8x16xf32, #tpu.memory_space<vmem>>, vector<1x8x16xf32>
    %11 = vector.shape_cast %10 : vector<1x8x16xf32> to vector<8x16xf32>
    %cst_12 = arith.constant dense<0.000000e+00> : vector<8x16xf32>
    %12 = tpu.matmul %11, %1, %cst_12 {dimension_numbers = #tpu.dot_dimension_numbers<[1], [0], [0], [1], [0, 0, 1, 1], [], []>} : vector<8x16xf32>, vector<16x16xf32>, vector<8x16xf32> -> vector<8x16xf32>
    %c1_13 = arith.constant 1 : index
    %c0_14 = arith.constant 0 : index
    %c0_15 = arith.constant 0 : index
    %13 = vector.load %arg3[%c1_13, %c0_14, %c0_15] : memref<3x16x128xf32, #tpu.memory_space<vmem>>, vector<1x16x128xf32>
    %14 = vector.shape_cast %13 : vector<1x16x128xf32> to vector<16x128xf32>
    %cst_16 = arith.constant dense<0.000000e+00> : vector<8x128xf32>
    %15 = tpu.matmul %12, %14, %cst_16 {dimension_numbers = #tpu.dot_dimension_numbers<[1], [0], [0], [1], [0, 0, 1, 1], [], []>} : vector<8x16xf32>, vector<16x128xf32>, vector<8x128xf32> -> vector<8x128xf32>
    %16 = arith.addf %9, %15 : vector<8x128xf32>
    %c2 = arith.constant 2 : index
    %c0_17 = arith.constant 0 : index
    %c0_18 = arith.constant 0 : index
    %17 = vector.load %arg2[%c2, %c0_17, %c0_18] : memref<3x8x16xf32, #tpu.memory_space<vmem>>, vector<1x8x16xf32>
    %18 = vector.shape_cast %17 : vector<1x8x16xf32> to vector<8x16xf32>
    %cst_19 = arith.constant dense<0.000000e+00> : vector<8x16xf32>
    %19 = tpu.matmul %18, %1, %cst_19 {dimension_numbers = #tpu.dot_dimension_numbers<[1], [0], [0], [1], [0, 0, 1, 1], [], []>} : vector<8x16xf32>, vector<16x16xf32>, vector<8x16xf32> -> vector<8x16xf32>
    %c2_20 = arith.constant 2 : index
    %c0_21 = arith.constant 0 : index
    %c0_22 = arith.constant 0 : index
    %20 = vector.load %arg3[%c2_20, %c0_21, %c0_22] : memref<3x16x128xf32, #tpu.memory_space<vmem>>, vector<1x16x128xf32>
    %21 = vector.shape_cast %20 : vector<1x16x128xf32> to vector<16x128xf32>
    %cst_23 = arith.constant dense<0.000000e+00> : vector<8x128xf32>
    %22 = tpu.matmul %19, %21, %cst_23 {dimension_numbers = #tpu.dot_dimension_numbers<[1], [0], [0], [1], [0, 0, 1, 1], [], []>} : vector<8x16xf32>, vector<16x128xf32>, vector<8x128xf32> -> vector<8x128xf32>
    %23 = arith.addf %16, %22 : vector<8x128xf32>
    %c0_24 = arith.constant 0 : index
    %c0_25 = arith.constant 0 : index
    %24 = vector.load %arg4[%c0_24, %c0_25] : memref<1x128xf32, #tpu.memory_space<vmem>>, vector<1x128xf32>
    %25 = vector.broadcast %24 : vector<1x128xf32> to vector<8x128xf32>
    %26 = arith.addf %23, %25 : vector<8x128xf32>
    %cst_26 = arith.constant 0.000000e+00 : f32
    %27 = vector.broadcast %cst_26 : f32 to vector<8x128xf32>
    %28 = arith.maximumf %26, %27 : vector<8x128xf32>
    %c0_27 = arith.constant 0 : index
    %c0_28 = arith.constant 0 : index
    %c0_29 = arith.constant 0 : index
    %29 = vector.load %arg5[%c0_27, %c0_28, %c0_29] : memref<2x4x8xf32, #tpu.memory_space<vmem>>, vector<1x4x8xf32>
    %30 = vector.shape_cast %29 : vector<1x4x8xf32> to vector<4x8xf32>
    %c1_30 = arith.constant 1 : index
    %c0_31 = arith.constant 0 : index
    %c0_32 = arith.constant 0 : index
    %31 = vector.load %arg5[%c1_30, %c0_31, %c0_32] : memref<2x4x8xf32, #tpu.memory_space<vmem>>, vector<1x4x8xf32>
    %32 = vector.shape_cast %31 : vector<1x4x8xf32> to vector<4x8xf32>
    %c0_33 = arith.constant 0 : index
    %c0_34 = arith.constant 0 : index
    %c0_35 = arith.constant 0 : index
    %33 = vector.load %arg6[%c0_33, %c0_34, %c0_35] : memref<2x128x64xf32, #tpu.memory_space<vmem>>, vector<1x128x64xf32>
    %34 = vector.shape_cast %33 : vector<1x128x64xf32> to vector<128x64xf32>
    %c1_36 = arith.constant 1 : index
    %c0_37 = arith.constant 0 : index
    %c0_38 = arith.constant 0 : index
    %35 = vector.load %arg6[%c1_36, %c0_37, %c0_38] : memref<2x128x64xf32, #tpu.memory_space<vmem>>, vector<1x128x64xf32>
    %36 = vector.shape_cast %35 : vector<1x128x64xf32> to vector<128x64xf32>
    %cst_39 = arith.constant dense<0.000000e+00> : vector<4x128xf32>
    %37 = tpu.matmul %30, %28, %cst_39 {dimension_numbers = #tpu.dot_dimension_numbers<[1], [0], [0], [1], [0, 0, 1, 1], [], []>} : vector<4x8xf32>, vector<8x128xf32>, vector<4x128xf32> -> vector<4x128xf32>
    %cst_40 = arith.constant dense<0.000000e+00> : vector<4x128xf32>
    %38 = tpu.matmul %32, %28, %cst_40 {dimension_numbers = #tpu.dot_dimension_numbers<[1], [0], [0], [1], [0, 0, 1, 1], [], []>} : vector<4x8xf32>, vector<8x128xf32>, vector<4x128xf32> -> vector<4x128xf32>
    %cst_41 = arith.constant dense<0.000000e+00> : vector<4x64xf32>
    %39 = tpu.matmul %37, %34, %cst_41 {dimension_numbers = #tpu.dot_dimension_numbers<[1], [0], [0], [1], [0, 0, 1, 1], [], []>} : vector<4x128xf32>, vector<128x64xf32>, vector<4x64xf32> -> vector<4x64xf32>
    %cst_42 = arith.constant dense<0.000000e+00> : vector<4x64xf32>
    %40 = tpu.matmul %37, %36, %cst_42 {dimension_numbers = #tpu.dot_dimension_numbers<[1], [0], [0], [1], [0, 0, 1, 1], [], []>} : vector<4x128xf32>, vector<128x64xf32>, vector<4x64xf32> -> vector<4x64xf32>
    %cst_43 = arith.constant dense<0.000000e+00> : vector<4x64xf32>
    %41 = tpu.matmul %38, %34, %cst_43 {dimension_numbers = #tpu.dot_dimension_numbers<[1], [0], [0], [1], [0, 0, 1, 1], [], []>} : vector<4x128xf32>, vector<128x64xf32>, vector<4x64xf32> -> vector<4x64xf32>
    %cst_44 = arith.constant dense<0.000000e+00> : vector<4x64xf32>
    %42 = tpu.matmul %38, %36, %cst_44 {dimension_numbers = #tpu.dot_dimension_numbers<[1], [0], [0], [1], [0, 0, 1, 1], [], []>} : vector<4x128xf32>, vector<128x64xf32>, vector<4x64xf32> -> vector<4x64xf32>
    %43 = arith.maximumf %39, %40 : vector<4x64xf32>
    %44 = arith.maximumf %41, %42 : vector<4x64xf32>
    %45 = arith.maximumf %43, %44 : vector<4x64xf32>
    %46 = arith.cmpf oeq, %39, %45 : vector<4x64xf32>
    %47 = arith.cmpf oeq, %40, %45 : vector<4x64xf32>
    %cst_45 = arith.constant dense<true> : vector<4x64xi1>
    %48 = arith.xori %46, %cst_45 : vector<4x64xi1>
    %49 = arith.andi %47, %48 : vector<4x64xi1>
    %50 = arith.ori %46, %49 : vector<4x64xi1>
    %51 = arith.cmpf oeq, %41, %45 : vector<4x64xf32>
    %cst_46 = arith.constant dense<true> : vector<4x64xi1>
    %52 = arith.xori %50, %cst_46 : vector<4x64xi1>
    %53 = arith.andi %51, %52 : vector<4x64xi1>
    %54 = arith.ori %50, %53 : vector<4x64xi1>
    %55 = arith.cmpf oeq, %42, %45 : vector<4x64xf32>
    %cst_47 = arith.constant dense<true> : vector<4x64xi1>
    %56 = arith.xori %54, %cst_47 : vector<4x64xi1>
    %57 = arith.andi %55, %56 : vector<4x64xi1>
    %cst_48 = arith.constant 0.000000e+00 : f32
    %58 = vector.broadcast %cst_48 : f32 to vector<4x64xf32>
    %59 = arith.select %46, %39, %58 : vector<4x64xi1>, vector<4x64xf32>
    %60 = arith.select %49, %40, %58 : vector<4x64xi1>, vector<4x64xf32>
    %61 = arith.select %53, %41, %58 : vector<4x64xi1>, vector<4x64xf32>
    %62 = arith.select %57, %42, %58 : vector<4x64xi1>, vector<4x64xf32>
    %c0_49 = arith.constant 0 : index
    %c0_50 = arith.constant 0 : index
    %c0_51 = arith.constant 0 : index
    %63 = vector.load %arg7[%c0_49, %c0_50, %c0_51] : memref<2x64x128xf32, #tpu.memory_space<vmem>>, vector<1x64x128xf32>
    %64 = vector.shape_cast %63 : vector<1x64x128xf32> to vector<64x128xf32>
    %c1_52 = arith.constant 1 : index
    %c0_53 = arith.constant 0 : index
    %c0_54 = arith.constant 0 : index
    %65 = vector.load %arg7[%c1_52, %c0_53, %c0_54] : memref<2x64x128xf32, #tpu.memory_space<vmem>>, vector<1x64x128xf32>
    %66 = vector.shape_cast %65 : vector<1x64x128xf32> to vector<64x128xf32>
    %c0_55 = arith.constant 0 : index
    %c0_56 = arith.constant 0 : index
    %c0_57 = arith.constant 0 : index
    %67 = vector.load %arg8[%c0_55, %c0_56, %c0_57] : memref<2x8x4xf32, #tpu.memory_space<vmem>>, vector<1x8x4xf32>
    %68 = vector.shape_cast %67 : vector<1x8x4xf32> to vector<8x4xf32>
    %c1_58 = arith.constant 1 : index
    %c0_59 = arith.constant 0 : index
    %c0_60 = arith.constant 0 : index
    %69 = vector.load %arg8[%c1_58, %c0_59, %c0_60] : memref<2x8x4xf32, #tpu.memory_space<vmem>>, vector<1x8x4xf32>
    %70 = vector.shape_cast %69 : vector<1x8x4xf32> to vector<8x4xf32>
    %cst_61 = arith.constant dense<0.000000e+00> : vector<4x128xf32>
    %71 = tpu.matmul %59, %64, %cst_61 {dimension_numbers = #tpu.dot_dimension_numbers<[1], [0], [0], [1], [0, 0, 1, 1], [], []>} : vector<4x64xf32>, vector<64x128xf32>, vector<4x128xf32> -> vector<4x128xf32>
    %cst_62 = arith.constant dense<0.000000e+00> : vector<4x128xf32>
    %72 = tpu.matmul %60, %66, %cst_62 {dimension_numbers = #tpu.dot_dimension_numbers<[1], [0], [0], [1], [0, 0, 1, 1], [], []>} : vector<4x64xf32>, vector<64x128xf32>, vector<4x128xf32> -> vector<4x128xf32>
    %73 = arith.addf %71, %72 : vector<4x128xf32>
    %cst_63 = arith.constant dense<0.000000e+00> : vector<4x128xf32>
    %74 = tpu.matmul %61, %64, %cst_63 {dimension_numbers = #tpu.dot_dimension_numbers<[1], [0], [0], [1], [0, 0, 1, 1], [], []>} : vector<4x64xf32>, vector<64x128xf32>, vector<4x128xf32> -> vector<4x128xf32>
    %cst_64 = arith.constant dense<0.000000e+00> : vector<4x128xf32>
    %75 = tpu.matmul %62, %66, %cst_64 {dimension_numbers = #tpu.dot_dimension_numbers<[1], [0], [0], [1], [0, 0, 1, 1], [], []>} : vector<4x64xf32>, vector<64x128xf32>, vector<4x128xf32> -> vector<4x128xf32>
    %76 = arith.addf %74, %75 : vector<4x128xf32>
    %cst_65 = arith.constant dense<0.000000e+00> : vector<8x128xf32>
    %77 = tpu.matmul %68, %73, %cst_65 {dimension_numbers = #tpu.dot_dimension_numbers<[1], [0], [0], [1], [0, 0, 1, 1], [], []>} : vector<8x4xf32>, vector<4x128xf32>, vector<8x128xf32> -> vector<8x128xf32>
    %cst_66 = arith.constant dense<0.000000e+00> : vector<8x128xf32>
    %78 = tpu.matmul %70, %76, %cst_66 {dimension_numbers = #tpu.dot_dimension_numbers<[1], [0], [0], [1], [0, 0, 1, 1], [], []>} : vector<8x4xf32>, vector<4x128xf32>, vector<8x128xf32> -> vector<8x128xf32>
    %79 = arith.addf %77, %78 : vector<8x128xf32>
    %c0_67 = arith.constant 0 : index
    %c0_68 = arith.constant 0 : index
    %80 = vector.load %arg9[%c0_67, %c0_68] : memref<8x8xf32, #tpu.memory_space<vmem>>, vector<8x8xf32>
    %cst_69 = arith.constant dense<0.000000e+00> : vector<8x128xf32>
    %81 = tpu.matmul %80, %79, %cst_69 {dimension_numbers = #tpu.dot_dimension_numbers<[1], [0], [0], [1], [0, 0, 1, 1], [], []>} : vector<8x8xf32>, vector<8x128xf32>, vector<8x128xf32> -> vector<8x128xf32>
    %c0_70 = arith.constant 0 : index
    %c0_71 = arith.constant 0 : index
    %82 = vector.load %arg10[%c0_70, %c0_71] : memref<128x32xf32, #tpu.memory_space<vmem>>, vector<128x32xf32>
    %cst_72 = arith.constant dense<0.000000e+00> : vector<8x32xf32>
    %83 = tpu.matmul %79, %82, %cst_72 {dimension_numbers = #tpu.dot_dimension_numbers<[1], [0], [0], [1], [0, 0, 1, 1], [], []>} : vector<8x128xf32>, vector<128x32xf32>, vector<8x32xf32> -> vector<8x32xf32>
    %c0_73 = arith.constant 0 : index
    %c0_74 = arith.constant 0 : index
    %84 = vector.load %arg11[%c0_73, %c0_74] : memref<128x32xf32, #tpu.memory_space<vmem>>, vector<128x32xf32>
    %cst_75 = arith.constant dense<0.000000e+00> : vector<8x32xf32>
    %85 = tpu.matmul %81, %84, %cst_75 {dimension_numbers = #tpu.dot_dimension_numbers<[1], [0], [0], [1], [0, 0, 1, 1], [], []>} : vector<8x128xf32>, vector<128x32xf32>, vector<8x32xf32> -> vector<8x32xf32>
    %86 = arith.addf %83, %85 : vector<8x32xf32>
    %c0_76 = arith.constant 0 : index
    %c0_77 = arith.constant 0 : index
    %87 = vector.load %arg12[%c0_76, %c0_77] : memref<1x32xf32, #tpu.memory_space<vmem>>, vector<1x32xf32>
    %88 = vector.broadcast %87 : vector<1x32xf32> to vector<8x32xf32>
    %89 = arith.addf %86, %88 : vector<8x32xf32>
    %cst_78 = arith.constant 0.000000e+00 : f32
    %90 = vector.broadcast %cst_78 : f32 to vector<8x32xf32>
    %91 = arith.maximumf %89, %90 : vector<8x32xf32>
    %c0_79 = arith.constant 0 : index
    %c0_80 = arith.constant 0 : index
    %c0_81 = arith.constant 0 : index
    %92 = vector.load %arg13[%c0_79, %c0_80, %c0_81] : memref<1x8x32xf32, #tpu.memory_space<vmem>>, vector<1x8x32xf32>
    %93 = vector.shape_cast %92 : vector<1x8x32xf32> to vector<8x32xf32>
    %94 = vector.shape_cast %91 : vector<8x32xf32> to vector<1x8x32xf32>
    tpu.vector_store %arg13[%c0_79, %c0_80, %c0_81], %94 {strides = array<i32>} : memref<1x8x32xf32, #tpu.memory_space<vmem>>, vector<1x8x32xf32>,
    return
  }
  func.func @transform_0(%arg0: i32) -> (i32, i32, i32) {
    %c0_i32 = arith.constant 0 : i32
    %c0_i32_0 = arith.constant 0 : i32
    %c0_i32_1 = arith.constant 0 : i32
    return %arg0, %c0_i32, %c0_i32_0 : i32, i32, i32
  }
  func.func @transform_1(%arg0: i32) -> (i32, i32, i32) {
    %c0_i32 = arith.constant 0 : i32
    %c0_i32_0 = arith.constant 0 : i32
    %c0_i32_1 = arith.constant 0 : i32
    %c0_i32_2 = arith.constant 0 : i32
    return %c0_i32, %c0_i32_0, %c0_i32_1 : i32, i32, i32
  }
  func.func @transform_2(%arg0: i32) -> (i32, i32, i32) {
    %c0_i32 = arith.constant 0 : i32
    %c0_i32_0 = arith.constant 0 : i32
    %c0_i32_1 = arith.constant 0 : i32
    %c0_i32_2 = arith.constant 0 : i32
    return %c0_i32, %c0_i32_0, %c0_i32_1 : i32, i32, i32
  }
  func.func @transform_3(%arg0: i32) -> (i32, i32) {
    %c0_i32 = arith.constant 0 : i32
    %c0_i32_0 = arith.constant 0 : i32
    %c0_i32_1 = arith.constant 0 : i32
    return %c0_i32, %c0_i32_0 : i32, i32
  }
  func.func @transform_4(%arg0: i32) -> (i32, i32, i32) {
    %c0_i32 = arith.constant 0 : i32
    %c0_i32_0 = arith.constant 0 : i32
    %c0_i32_1 = arith.constant 0 : i32
    %c0_i32_2 = arith.constant 0 : i32
    return %c0_i32, %c0_i32_0, %c0_i32_1 : i32, i32, i32
  }
  func.func @transform_5(%arg0: i32) -> (i32, i32, i32) {
    %c0_i32 = arith.constant 0 : i32
    %c0_i32_0 = arith.constant 0 : i32
    %c0_i32_1 = arith.constant 0 : i32
    %c0_i32_2 = arith.constant 0 : i32
    return %c0_i32, %c0_i32_0, %c0_i32_1 : i32, i32, i32
  }
  func.func @transform_6(%arg0: i32) -> (i32, i32, i32) {
    %c0_i32 = arith.constant 0 : i32
    %c0_i32_0 = arith.constant 0 : i32
    %c0_i32_1 = arith.constant 0 : i32
    %c0_i32_2 = arith.constant 0 : i32
    return %c0_i32, %c0_i32_0, %c0_i32_1 : i32, i32, i32
  }
  func.func @transform_7(%arg0: i32) -> (i32, i32, i32) {
    %c0_i32 = arith.constant 0 : i32
    %c0_i32_0 = arith.constant 0 : i32
    %c0_i32_1 = arith.constant 0 : i32
    %c0_i32_2 = arith.constant 0 : i32
    return %c0_i32, %c0_i32_0, %c0_i32_1 : i32, i32, i32
  }
  func.func @transform_8(%arg0: i32) -> (i32, i32) {
    %c0_i32 = arith.constant 0 : i32
    %c0_i32_0 = arith.constant 0 : i32
    %c0_i32_1 = arith.constant 0 : i32
    return %c0_i32, %c0_i32_0 : i32, i32
  }
  func.func @transform_9(%arg0: i32) -> (i32, i32) {
    %c0_i32 = arith.constant 0 : i32
    %c0_i32_0 = arith.constant 0 : i32
    %c0_i32_1 = arith.constant 0 : i32
    return %c0_i32, %c0_i32_0 : i32, i32
  }
  func.func @transform_10(%arg0: i32) -> (i32, i32) {
    %c0_i32 = arith.constant 0 : i32
    %c0_i32_0 = arith.constant 0 : i32
    %c0_i32_1 = arith.constant 0 : i32
    return %c0_i32, %c0_i32_0 : i32, i32
  }
  func.func @transform_11(%arg0: i32) -> (i32, i32) {
    %c0_i32 = arith.constant 0 : i32
    %c0_i32_0 = arith.constant 0 : i32
    %c0_i32_1 = arith.constant 0 : i32
    return %c0_i32, %c0_i32_0 : i32, i32
  }
  func.func @transform_12(%arg0: i32) -> (i32, i32, i32) {
    %c0_i32 = arith.constant 0 : i32
    %c0_i32_0 = arith.constant 0 : i32
    %c0_i32_1 = arith.constant 0 : i32
    return %arg0, %c0_i32, %c0_i32_0 : i32, i32, i32
  }
}

</mosaic_0001>

<llo_original>
// kernel: stacked_conv_autoencoder_forward.1
$region0: #{stacked_conv_autoencoder_forward.1}
  #allocation0 [shape = 'u32[]', space=smem, size = 0x4, offset = 0x4, fixed_abs, tag = 'smem constant byte address 0x4 - core index']
  #allocation1 [shape = 'u32[144,128]{1,0:T(1,128)}', space=vmem, size = 0x12000, scoped, tag = 'internal scratch']
  %s0 = inlined_call_operand.vmem [shape: f32[2,16,16], index: 0, kind: input, shape index: {}]
  %s1 = inlined_call_operand.vmem [shape: f32[3,8,16], index: 1, kind: input, shape index: {}]
  %s2 = inlined_call_operand.vmem [shape: f32[3,16,128], index: 2, kind: input, shape index: {}]
  %s3 = inlined_call_operand.vmem [shape: f32[1,128], index: 3, kind: input, shape index: {}]
  %s4 = inlined_call_operand.vmem [shape: f32[2,4,8], index: 4, kind: input, shape index: {}]
  %s5 = inlined_call_operand.vmem [shape: f32[2,128,64], index: 5, kind: input, shape index: {}]
  %s6 = inlined_call_operand.vmem [shape: f32[2,64,128], index: 6, kind: input, shape index: {}]
  %s7 = inlined_call_operand.vmem [shape: f32[2,8,4], index: 7, kind: input, shape index: {}]
  %s8 = inlined_call_operand.vmem [shape: f32[8,8], index: 8, kind: input, shape index: {}]
  %s9 = inlined_call_operand.vmem [shape: f32[128,32], index: 9, kind: input, shape index: {}]
  %s10 = inlined_call_operand.vmem [shape: f32[128,32], index: 10, kind: input, shape index: {}]
  %s11 = inlined_call_operand.vmem [shape: f32[1,32], index: 11, kind: input, shape index: {}]
  %s12 = inlined_call_operand.vmem [shape: f32[2,8,32], index: 12, kind: output, shape index: {}]
  %s13 = sld [smem:[#allocation0]]
  $region81: #{stacked_conv_autoencoder_forward.1} parent=0
    _
  %s15 = ssub.s32 1, %s13
  %s16 = scalar_select 0, %s15, %s13
  loop: start=0, step=1, limit=4
  $region2: #{stacked_conv_autoencoder_forward.1} parent=0 // loop_pre_header
    _
  $region3: #{stacked_conv_autoencoder_forward.1} parent=0 // loop_header
    %s18 = sphi 0, %s22
    %p19 = scmp.ge.s32.totalorder %s18, 4
    %s28 = sphi 0, %s30
    %s31 = sphi 0, %s28
    %s32 = sphi 0, %s31
    %s48 = sphi 0, %s32
    %s52 = sphi 0, %s52
    %s54 = sphi 0, %s52
    %s55 = sphi 0, %s54
    %s69 = sphi 0, %s55
    %s73 = sphi 0, %s73
    %s75 = sphi 0, %s73
    %s76 = sphi 0, %s75
    %s90 = sphi 0, %s76
    %s94 = sphi 0, %s94
    %s96 = sphi 0, %s94
    %s97 = sphi 0, %s96
    %s111 = sphi 0, %s97
    %s115 = sphi 0, %s115
    %s117 = sphi 0, %s115
    %s118 = sphi 0, %s117
    %s132 = sphi 0, %s118
    %s136 = sphi 0, %s136
    %s138 = sphi 0, %s136
    %s139 = sphi 0, %s138
    %s153 = sphi 0, %s139
    %s157 = sphi 0, %s157
    %s159 = sphi 0, %s157
    %s160 = sphi 0, %s159
    %s174 = sphi 0, %s160
    %s178 = sphi 0, %s178
    %s180 = sphi 0, %s178
    %s181 = sphi 0, %s180
    %s195 = sphi 0, %s181
    %s199 = sphi 0, %s199
    %s201 = sphi 0, %s199
    %s202 = sphi 0, %s201
    %s216 = sphi 0, %s202
    %s220 = sphi 0, %s220
    %s222 = sphi 0, %s220
    %s223 = sphi 0, %s222
    %s237 = sphi 0, %s223
    %s241 = sphi 0, %s241
    %s243 = sphi 0, %s241
    %s244 = sphi 0, %s243
    %s258 = sphi 0, %s244
    %s262 = sphi 0, %s262
    %s264 = sphi 0, %s262
    %s265 = sphi 0, %s264
    %s279 = sphi 0, %s265
    %s285 = sphi 0, %s287
    %s288 = sphi 0, %s285
    %s289 = sphi 0, %s288
    %s305 = sphi 0, %s289
  $region4: #{stacked_conv_autoencoder_forward.1} parent=0 // loop_header_branch
    %21 = sbr.rel (%p19) target = $region8
  $region5: #{stacked_conv_autoencoder_forward.1} parent=0 // loop_body
    %s23 = ssub.s32 %s18, 1
    %s24 = ssub.s32 %s18, 2
    %s25 = sadd.s32 %s18, 1
    %s26 = ssub.s32 %s18, %s25
    %p27 = scmp.eq.s32.totalorder %s26, 0
    %s29 = sadd.s32 %s28, 1
    %s30 = scalar_select %p27, %s28, %s29
    %p33 = pneg %p27
    %p34 = scmp.eq.s32.totalorder %s18, 1
    %p35 = por %p33, %p34
    %p36 = scmp.ne.s32.totalorder %s28, %s31
    %p37 = scmp.eq.s32.totalorder %s18, 0
    %p38 = por %p36, %p37
    %p39 = scmp.ne.s32.totalorder %s28, %s31
    %p40 = scmp.eq.s32.totalorder %s23, 1
    %p41 = por %p39, %p40
    %p42 = scmp.ne.s32.totalorder %s31, %s32
    %p43 = scmp.eq.s32.totalorder %s23, 0
    %p44 = por %p42, %p43
    %p45 = scmp.ne.s32.totalorder %s31, %s32
    %p46 = scmp.eq.s32.totalorder %s24, 1
    %p47 = por %p45, %p46
    %p49 = scmp.ne.s32.totalorder %s32, %s48
    %p50 = scmp.eq.s32.totalorder %s24, 0
    %p51 = por %p49, %p50
    %s53 = sadd.s32 %s52, 1
    %p56 = scmp.eq.s32.totalorder %s18, 1
    %p57 = scmp.ne.s32.totalorder %s52, %s54
    %p58 = scmp.eq.s32.totalorder %s18, 0
    %p59 = por %p57, %p58
    %p60 = scmp.ne.s32.totalorder %s52, %s54
    %p61 = scmp.eq.s32.totalorder %s23, 1
    %p62 = por %p60, %p61
    %p63 = scmp.ne.s32.totalorder %s54, %s55
    %p64 = scmp.eq.s32.totalorder %s23, 0
    %p65 = por %p63, %p64
    %p66 = scmp.ne.s32.totalorder %s54, %s55
    %p67 = scmp.eq.s32.totalorder %s24, 1
    %p68 = por %p66, %p67
    %p70 = scmp.ne.s32.totalorder %s55, %s69
    %p71 = scmp.eq.s32.totalorder %s24, 0
    %p72 = por %p70, %p71
    %s74 = sadd.s32 %s73, 1
    %p77 = scmp.eq.s32.totalorder %s18, 1
    %p78 = scmp.ne.s32.totalorder %s73, %s75
    %p79 = scmp.eq.s32.totalorder %s18, 0
    %p80 = por %p78, %p79
    %p81 = scmp.ne.s32.totalorder %s73, %s75
    %p82 = scmp.eq.s32.totalorder %s23, 1
    %p83 = por %p81, %p82
    %p84 = scmp.ne.s32.totalorder %s75, %s76
    %p85 = scmp.eq.s32.totalorder %s23, 0
    %p86 = por %p84, %p85
    %p87 = scmp.ne.s32.totalorder %s75, %s76
    %p88 = scmp.eq.s32.totalorder %s24, 1
    %p89 = por %p87, %p88
    %p91 = scmp.ne.s32.totalorder %s76, %s90
    %p92 = scmp.eq.s32.totalorder %s24, 0
    %p93 = por %p91, %p92
    %s95 = sadd.s32 %s94, 1
    %p98 = scmp.eq.s32.totalorder %s18, 1
    %p99 = scmp.ne.s32.totalorder %s94, %s96
    %p100 = scmp.eq.s32.totalorder %s18, 0
    %p101 = por %p99, %p100
    %p102 = scmp.ne.s32.totalorder %s94, %s96
    %p103 = scmp.eq.s32.totalorder %s23, 1
    %p104 = por %p102, %p103
    %p105 = scmp.ne.s32.totalorder %s96, %s97
    %p106 = scmp.eq.s32.totalorder %s23, 0
    %p107 = por %p105, %p106
    %p108 = scmp.ne.s32.totalorder %s96, %s97
    %p109 = scmp.eq.s32.totalorder %s24, 1
    %p110 = por %p108, %p109
    %p112 = scmp.ne.s32.totalorder %s97, %s111
    %p113 = scmp.eq.s32.totalorder %s24, 0
    %p114 = por %p112, %p113
    %s116 = sadd.s32 %s115, 1
    %p119 = scmp.eq.s32.totalorder %s18, 1
    %p120 = scmp.ne.s32.totalorder %s115, %s117
    %p121 = scmp.eq.s32.totalorder %s18, 0
    %p122 = por %p120, %p121
    %p123 = scmp.ne.s32.totalorder %s115, %s117
    %p124 = scmp.eq.s32.totalorder %s23, 1
    %p125 = por %p123, %p124
    %p126 = scmp.ne.s32.totalorder %s117, %s118
    %p127 = scmp.eq.s32.totalorder %s23, 0
    %p128 = por %p126, %p127
    %p129 = scmp.ne.s32.totalorder %s117, %s118
    %p130 = scmp.eq.s32.totalorder %s24, 1
    %p131 = por %p129, %p130
    %p133 = scmp.ne.s32.totalorder %s118, %s132
    %p134 = scmp.eq.s32.totalorder %s24, 0
    %p135 = por %p133, %p134
    %s137 = sadd.s32 %s136, 1
    %p140 = scmp.eq.s32.totalorder %s18, 1
    %p141 = scmp.ne.s32.totalorder %s136, %s138
    %p142 = scmp.eq.s32.totalorder %s18, 0
    %p143 = por %p141, %p142
    %p144 = scmp.ne.s32.totalorder %s136, %s138
    %p145 = scmp.eq.s32.totalorder %s23, 1
    %p146 = por %p144, %p145
    %p147 = scmp.ne.s32.totalorder %s138, %s139
    %p148 = scmp.eq.s32.totalorder %s23, 0
    %p149 = por %p147, %p148
    %p150 = scmp.ne.s32.totalorder %s138, %s139
    %p151 = scmp.eq.s32.totalorder %s24, 1
    %p152 = por %p150, %p151
    %p154 = scmp.ne.s32.totalorder %s139, %s153
    %p155 = scmp.eq.s32.totalorder %s24, 0
    %p156 = por %p154, %p155
    %s158 = sadd.s32 %s157, 1
    %p161 = scmp.eq.s32.totalorder %s18, 1
    %p162 = scmp.ne.s32.totalorder %s157, %s159
    %p163 = scmp.eq.s32.totalorder %s18, 0
    %p164 = por %p162, %p163
    %p165 = scmp.ne.s32.totalorder %s157, %s159
    %p166 = scmp.eq.s32.totalorder %s23, 1
    %p167 = por %p165, %p166
    %p168 = scmp.ne.s32.totalorder %s159, %s160
    %p169 = scmp.eq.s32.totalorder %s23, 0
    %p170 = por %p168, %p169
    %p171 = scmp.ne.s32.totalorder %s159, %s160
    %p172 = scmp.eq.s32.totalorder %s24, 1
    %p173 = por %p171, %p172
    %p175 = scmp.ne.s32.totalorder %s160, %s174
    %p176 = scmp.eq.s32.totalorder %s24, 0
    %p177 = por %p175, %p176
    %s179 = sadd.s32 %s178, 1
    %p182 = scmp.eq.s32.totalorder %s18, 1
    %p183 = scmp.ne.s32.totalorder %s178, %s180
    %p184 = scmp.eq.s32.totalorder %s18, 0
    %p185 = por %p183, %p184
    %p186 = scmp.ne.s32.totalorder %s178, %s180
    %p187 = scmp.eq.s32.totalorder %s23, 1
    %p188 = por %p186, %p187
    %p189 = scmp.ne.s32.totalorder %s180, %s181
    %p190 = scmp.eq.s32.totalorder %s23, 0
    %p191 = por %p189, %p190
    %p192 = scmp.ne.s32.totalorder %s180, %s181
    %p193 = scmp.eq.s32.totalorder %s24, 1
    %p194 = por %p192, %p193
    %p196 = scmp.ne.s32.totalorder %s181, %s195
    %p197 = scmp.eq.s32.totalorder %s24, 0
    %p198 = por %p196, %p197
    %s200 = sadd.s32 %s199, 1
    %p203 = scmp.eq.s32.totalorder %s18, 1
    %p204 = scmp.ne.s32.totalorder %s199, %s201
    %p205 = scmp.eq.s32.totalorder %s18, 0
    %p206 = por %p204, %p205
    %p207 = scmp.ne.s32.totalorder %s199, %s201
    %p208 = scmp.eq.s32.totalorder %s23, 1
    %p209 = por %p207, %p208
    %p210 = scmp.ne.s32.totalorder %s201, %s202
    %p211 = scmp.eq.s32.totalorder %s23, 0
    %p212 = por %p210, %p211
    %p213 = scmp.ne.s32.totalorder %s201, %s202
    %p214 = scmp.eq.s32.totalorder %s24, 1
    %p215 = por %p213, %p214
    %p217 = scmp.ne.s32.totalorder %s202, %s216
    %p218 = scmp.eq.s32.totalorder %s24, 0
    %p219 = por %p217, %p218
    %s221 = sadd.s32 %s220, 1
    %p224 = scmp.eq.s32.totalorder %s18, 1
    %p225 = scmp.ne.s32.totalorder %s220, %s222
    %p226 = scmp.eq.s32.totalorder %s18, 0
    %p227 = por %p225, %p226
    %p228 = scmp.ne.s32.totalorder %s220, %s222
    %p229 = scmp.eq.s32.totalorder %s23, 1
    %p230 = por %p228, %p229
    %p231 = scmp.ne.s32.totalorder %s222, %s223
    %p232 = scmp.eq.s32.totalorder %s23, 0
    %p233 = por %p231, %p232
    %p234 = scmp.ne.s32.totalorder %s222, %s223
    %p235 = scmp.eq.s32.totalorder %s24, 1
    %p236 = por %p234, %p235
    %p238 = scmp.ne.s32.totalorder %s223, %s237
    %p239 = scmp.eq.s32.totalorder %s24, 0
    %p240 = por %p238, %p239
    %s242 = sadd.s32 %s241, 1
    %p245 = scmp.eq.s32.totalorder %s18, 1
    %p246 = scmp.ne.s32.totalorder %s241, %s243
    %p247 = scmp.eq.s32.totalorder %s18, 0
    %p248 = por %p246, %p247
    %p249 = scmp.ne.s32.totalorder %s241, %s243
    %p250 = scmp.eq.s32.totalorder %s23, 1
    %p251 = por %p249, %p250
    %p252 = scmp.ne.s32.totalorder %s243, %s244
    %p253 = scmp.eq.s32.totalorder %s23, 0
    %p254 = por %p252, %p253
    %p255 = scmp.ne.s32.totalorder %s243, %s244
    %p256 = scmp.eq.s32.totalorder %s24, 1
    %p257 = por %p255, %p256
    %p259 = scmp.ne.s32.totalorder %s244, %s258
    %p260 = scmp.eq.s32.totalorder %s24, 0
    %p261 = por %p259, %p260
    %s263 = sadd.s32 %s262, 1
    %p266 = scmp.eq.s32.totalorder %s18, 1
    %p267 = scmp.ne.s32.totalorder %s262, %s264
    %p268 = scmp.eq.s32.totalorder %s18, 0
    %p269 = por %p267, %p268
    %p270 = scmp.ne.s32.totalorder %s262, %s264
    %p271 = scmp.eq.s32.totalorder %s23, 1
    %p272 = por %p270, %p271
    %p273 = scmp.ne.s32.totalorder %s264, %s265
    %p274 = scmp.eq.s32.totalorder %s23, 0
    %p275 = por %p273, %p274
    %p276 = scmp.ne.s32.totalorder %s264, %s265
    %p277 = scmp.eq.s32.totalorder %s24, 1
    %p278 = por %p276, %p277
    %p280 = scmp.ne.s32.totalorder %s265, %s279
    %p281 = scmp.eq.s32.totalorder %s24, 0
    %p282 = por %p280, %p281
    %s283 = ssub.s32 %s18, %s25
    %p284 = scmp.eq.s32.totalorder %s283, 0
    %s286 = sadd.s32 %s285, 1
    %s287 = scalar_select %p284, %s285, %s286
    %p290 = pneg %p284
    %p291 = scmp.eq.s32.totalorder %s18, 1
    %p292 = por %p290, %p291
    %p293 = scmp.ne.s32.totalorder %s285, %s288
    %p294 = scmp.eq.s32.totalorder %s18, 0
    %p295 = por %p293, %p294
    %p296 = scmp.ne.s32.totalorder %s285, %s288
    %p297 = scmp.eq.s32.totalorder %s23, 1
    %p298 = por %p296, %p297
    %p299 = scmp.ne.s32.totalorder %s288, %s289
    %p300 = scmp.eq.s32.totalorder %s23, 0
    %p301 = por %p299, %p300
    %p302 = scmp.ne.s32.totalorder %s288, %s289
    %p303 = scmp.eq.s32.totalorder %s24, 1
    %p304 = por %p302, %p303
    %p306 = scmp.ne.s32.totalorder %s289, %s305
    %p307 = scmp.eq.s32.totalorder %s24, 0
    %p308 = por %p306, %p307
    %p309 = scmp.le.s32.totalorder 1, %s18
    %p310 = scmp.lt.s32.totalorder %s18, 3
    %p311 = pnand %p309, %p310
    %p312 = pneg %p311
    // Predicated region
    $region9: #{stacked_conv_autoencoder_forward.1} parent=5 // pred_check
      _
    $region10: #{stacked_conv_autoencoder_forward.1} parent=5 // pred_check_branch
      %314 = sbr.rel (%p311) target = $region12
    $region11: #{stacked_conv_autoencoder_forward.1} parent=5 // pred_region
      %s315 = ssub.s32 %s18, 1
      // Predicated region
      $region13: #{stacked_conv_autoencoder_forward.1} parent=11 // pred_check
        %p316 = pneg %p65
      $region14: #{stacked_conv_autoencoder_forward.1} parent=11 // pred_check_branch
        %318 = sbr.rel (%p316) target = $region16
      $region15: #{stacked_conv_autoencoder_forward.1} parent=11 // pred_region
        _
      $region16: #{stacked_conv_autoencoder_forward.1} parent=11 // pred_fallthru
        _
      // Predicated region
      $region17: #{stacked_conv_autoencoder_forward.1} parent=11 // pred_check
        %p319 = pneg %p86
      $region18: #{stacked_conv_autoencoder_forward.1} parent=11 // pred_check_branch
        %321 = sbr.rel (%p319) target = $region20
      $region19: #{stacked_conv_autoencoder_forward.1} parent=11 // pred_region
        _
      $region20: #{stacked_conv_autoencoder_forward.1} parent=11 // pred_fallthru
        _
      // Predicated region
      $region21: #{stacked_conv_autoencoder_forward.1} parent=11 // pred_check
        %p322 = pneg %p107
      $region22: #{stacked_conv_autoencoder_forward.1} parent=11 // pred_check_branch
        %324 = sbr.rel (%p322) target = $region24
      $region23: #{stacked_conv_autoencoder_forward.1} parent=11 // pred_region
        _
      $region24: #{stacked_conv_autoencoder_forward.1} parent=11 // pred_fallthru
        _
      // Predicated region
      $region25: #{stacked_conv_autoencoder_forward.1} parent=11 // pred_check
        %p325 = pneg %p128
      $region26: #{stacked_conv_autoencoder_forward.1} parent=11 // pred_check_branch
        %327 = sbr.rel (%p325) target = $region28
      $region27: #{stacked_conv_autoencoder_forward.1} parent=11 // pred_region
        _
      $region28: #{stacked_conv_autoencoder_forward.1} parent=11 // pred_fallthru
        _
      // Predicated region
      $region29: #{stacked_conv_autoencoder_forward.1} parent=11 // pred_check
        %p328 = pneg %p149
      $region30: #{stacked_conv_autoencoder_forward.1} parent=11 // pred_check_branch
        %330 = sbr.rel (%p328) target = $region32
      $region31: #{stacked_conv_autoencoder_forward.1} parent=11 // pred_region
        _
      $region32: #{stacked_conv_autoencoder_forward.1} parent=11 // pred_fallthru
        _
      // Predicated region
      $region33: #{stacked_conv_autoencoder_forward.1} parent=11 // pred_check
        %p331 = pneg %p170
      $region34: #{stacked_conv_autoencoder_forward.1} parent=11 // pred_check_branch
        %333 = sbr.rel (%p331) target = $region36
      $region35: #{stacked_conv_autoencoder_forward.1} parent=11 // pred_region
        _
      $region36: #{stacked_conv_autoencoder_forward.1} parent=11 // pred_fallthru
        _
      // Predicated region
      $region37: #{stacked_conv_autoencoder_forward.1} parent=11 // pred_check
        %p334 = pneg %p191
      $region38: #{stacked_conv_autoencoder_forward.1} parent=11 // pred_check_branch
        %336 = sbr.rel (%p334) target = $region40
      $region39: #{stacked_conv_autoencoder_forward.1} parent=11 // pred_region
        _
      $region40: #{stacked_conv_autoencoder_forward.1} parent=11 // pred_fallthru
        _
      // Predicated region
      $region41: #{stacked_conv_autoencoder_forward.1} parent=11 // pred_check
        %p337 = pneg %p212
      $region42: #{stacked_conv_autoencoder_forward.1} parent=11 // pred_check_branch
        %339 = sbr.rel (%p337) target = $region44
      $region43: #{stacked_conv_autoencoder_forward.1} parent=11 // pred_region
        _
      $region44: #{stacked_conv_autoencoder_forward.1} parent=11 // pred_fallthru
        _
      // Predicated region
      $region45: #{stacked_conv_autoencoder_forward.1} parent=11 // pred_check
        %p340 = pneg %p233
      $region46: #{stacked_conv_autoencoder_forward.1} parent=11 // pred_check_branch
        %342 = sbr.rel (%p340) target = $region48
      $region47: #{stacked_conv_autoencoder_forward.1} parent=11 // pred_region
        _
      $region48: #{stacked_conv_autoencoder_forward.1} parent=11 // pred_fallthru
        _
      // Predicated region
      $region49: #{stacked_conv_autoencoder_forward.1} parent=11 // pred_check
        %p343 = pneg %p254
      $region50: #{stacked_conv_autoencoder_forward.1} parent=11 // pred_check_branch
        %345 = sbr.rel (%p343) target = $region52
      $region51: #{stacked_conv_autoencoder_forward.1} parent=11 // pred_region
        _
      $region52: #{stacked_conv_autoencoder_forward.1} parent=11 // pred_fallthru
        _
      // Predicated region
      $region53: #{stacked_conv_autoencoder_forward.1} parent=11 // pred_check
        %p346 = pneg %p275
      $region54: #{stacked_conv_autoencoder_forward.1} parent=11 // pred_check_branch
        %348 = sbr.rel (%p346) target = $region56
      $region55: #{stacked_conv_autoencoder_forward.1} parent=11 // pred_region
        _
      $region56: #{stacked_conv_autoencoder_forward.1} parent=11 // pred_fallthru
        _
    $region12: #{stacked_conv_autoencoder_forward.1} parent=5 // pred_fallthru
      _
    %p349 = scmp.lt.s32.totalorder %s18, 2
    // Predicated region
    $region57: #{stacked_conv_autoencoder_forward.1} parent=5 // pred_check
      %p350 = pneg %p349
    $region58: #{stacked_conv_autoencoder_forward.1} parent=5 // pred_check_branch
      %352 = sbr.rel (%p350) target = $region60
    $region59: #{stacked_conv_autoencoder_forward.1} parent=5 // pred_region
      // Predicated region
      $region61: #{stacked_conv_autoencoder_forward.1} parent=59 // pred_check
        %p353 = pneg %p38
      $region62: #{stacked_conv_autoencoder_forward.1} parent=59 // pred_check_branch
        %355 = sbr.rel (%p353) target = $region64
      $region63: #{stacked_conv_autoencoder_forward.1} parent=59 // pred_region
        %p356 = scmp.lt.s32.totalorder %s18, 1
        %s357 = scalar_select %p356, %s18, 1
        %s358 = smul.addr %s357, 2
        %s359 = smul.addr %s358, 8
        %s360 = scalar_lea.vmem %s0, %s359
      $region64: #{stacked_conv_autoencoder_forward.1} parent=59 // pred_fallthru
        _
    $region60: #{stacked_conv_autoencoder_forward.1} parent=5 // pred_fallthru
      _
    %p361 = scmp.le.s32.totalorder 1, %s18
    %p362 = scmp.lt.s32.totalorder %s18, 3
    %p363 = pnand %p361, %p362
    %p364 = pneg %p363
    // Predicated region
    $region65: #{stacked_conv_autoencoder_forward.1} parent=5 // pred_check
      _
    $region66: #{stacked_conv_autoencoder_forward.1} parent=5 // pred_check_branch
      %366 = sbr.rel (%p363) target = $region68
    $region67: #{stacked_conv_autoencoder_forward.1} parent=5 // pred_region
      %s367 = ssub.s32 %s18, 1
      %p368 = scmp.lt.s32.totalorder %s23, 1
      %s369 = scalar_select %p368, %s23, 1
      %s370 = smul.addr %s369, 2
      %s371 = smul.addr %s370, 8
      %s372 = scalar_lea.vmem %s0, %s371
      %p373 = pneg %p44
      %p374 = pneg %p41
      %p375 = pneg %p65
      %p376 = pneg %p62
      %p377 = pneg %p86
      %p378 = pneg %p83
      %p379 = pneg %p107
      %p380 = pneg %p104
      %p381 = pneg %p128
      %p382 = pneg %p125
      %p383 = pneg %p149
      %p384 = pneg %p146
      %p385 = pneg %p170
      %p386 = pneg %p167
      %p387 = pneg %p191
      %p388 = pneg %p188
      %p389 = pneg %p212
      %p390 = pneg %p209
      %p391 = pneg %p233
      %p392 = pneg %p230
      %p393 = pneg %p254
      %p394 = pneg %p251
      %p395 = pneg %p275
      %p396 = pneg %p272
      %p397 = pneg %p301
      %p398 = pneg %p298
      %p399 = scmp.lt.s32.totalorder %s23, 1
      %s400 = scalar_select %p399, %s23, 1
      %s401 = smul.addr %s400, 8
      %s402 = scalar_lea.vmem %s12, %s401
      %p403 = scmp.lt.s32.totalorder %s23, 1
      %s404 = scalar_select %p403, %s23, 1
      %s405 = smul.addr %s404, 2
      %s406 = smul.addr %s405, 8
      %s407 = scalar_lea.vmem %s0, %s406
      %p408 = scmp.lt.s32.totalorder %s23, 1
      %s409 = scalar_select %p408, %s23, 1
      %s410 = smul.addr %s409, 8
      %s411 = scalar_lea.vmem %s12, %s410
      %v412 = vld [vmem:[%s407] sm:$0xff]
      %v413 = vld [vmem:[%s407 + $0x8] sm:$0xff]
      %v414 = vld [vmem:[%s1] sm:$0xff]
      %vm415 = vcmask 130048
      %v417 = vsel %vm415, %v414, 0
      %419 = vmatprep.subr.mxu0 0.0
      %420 = vmatpush1.msra.mxu0 0.0
      %421 = vmatprep.subr.mxu0 0.0
      %422 = vmatpush1.msra.mxu0 0.0
      %423 = vmatprep.subr.mxu0 0.0
      %424 = vmatpush1.msra.mxu0 0.0
      %425 = vmatprep.subr.mxu0 0.0
      %426 = vmatpush1.msra.mxu0 0.0
      %427 = vmatprep.subr.mxu0 0.0
      %428 = vmatpush1.msra.mxu0 0.0
      %429 = vmatprep.subr.mxu0 0.0
      %430 = vmatpush1.msra.mxu0 0.0
      %431 = vmatprep.subr.mxu0 0.0
      %432 = vmatpush1.msra.mxu0 0.0
      %433 = vmatprep.subr.mxu0 0.0
      %434 = vmatpush1.msra.mxu0 0.0
      %435 = vmatprep.subr.mxu0 0.0
      %436 = vmatpush1.msra.mxu0 0.0
      %437 = vmatprep.subr.mxu0 0.0
      %438 = vmatpush1.msra.mxu0 0.0
      %439 = vmatprep.subr.mxu0 0.0
      %440 = vmatpush1.msra.mxu0 0.0
      %441 = vmatprep.subr.mxu0 0.0
      %442 = vmatpush1.msra.mxu0 0.0
      %443 = vmatprep.subr.mxu0 0.0
      %444 = vmatpush1.msra.mxu0 0.0
      %445 = vmatprep.subr.mxu0 0.0
      %446 = vmatpush1.msra.mxu0 0.0
      %447 = vmatprep.subr.mxu0 0.0
      %448 = vmatpush1.msra.mxu0 %v413
      %449 = vmatprep.subr.mxu0 0.0
      %450 = vmatpush1.msra.mxu0 %v412
      %451 = vmatprep.subr.mxu0 0.0
      %452 = vmatpush2.msra.mxu0 0.0
      %453 = vmatprep.subr.mxu0 0.0
      %454 = vmatpush2.msra.mxu0 0.0
      %455 = vmatprep.subr.mxu0 0.0
      %456 = vmatpush2.msra.mxu0 0.0
      %457 = vmatprep.subr.mxu0 0.0
      %458 = vmatpush2.msra.mxu0 0.0
      %459 = vmatprep.subr.mxu0 0.0
      %460 = vmatpush2.msra.mxu0 0.0
      %461 = vmatprep.subr.mxu0 0.0
      %462 = vmatpush2.msra.mxu0 0.0
      %463 = vmatprep.subr.mxu0 0.0
      %464 = vmatpush2.msra.mxu0 0.0
      %465 = vmatprep.subr.mxu0 0.0
      %466 = vmatpush2.msra.mxu0 0.0
      %467 = vmatprep.subr.mxu0 0.0
      %468 = vmatpush2.msra.mxu0 0.0
      %469 = vmatprep.subr.mxu0 0.0
      %470 = vmatpush2.msra.mxu0 0.0
      %471 = vmatprep.subr.mxu0 0.0
      %472 = vmatpush2.msra.mxu0 0.0
      %473 = vmatprep.subr.mxu0 0.0
      %474 = vmatpush2.msra.mxu0 0.0
      %475 = vmatprep.subr.mxu0 0.0
      %476 = vmatpush2.msra.mxu0 0.0
      %477 = vmatprep.subr.mxu0 0.0
      %478 = vmatpush2.msra.mxu0 0.0
      %479 = vmatprep.subr.mxu0 0.0
      %480 = vmatpush2.msra.mxu0 0.0
      %481 = vmatprep.subr.mxu0 0.0
      %482 = vmatpush2.msra.mxu0 0.0
      %483 = vmatprep.mubr.f32.mxu0 0.0
      %484 = vmatmul.mubr.f32.gmra.mxu0 %v417
      %v485 = vpop.f32.mrf.mxu0
      %v486 = vadd.f32 0.0, %v485
      %v487 = vpop.f32.mrf.mxu0
      %488 = vdwg.mxu0
      %v489 = vld [vmem:[%s2] sm:$0xff]
      %v490 = vld [vmem:[%s2 + $0x8] sm:$0xff]
      %s491 = scalar_lea.vmem %s1, 8
      %v492 = vld [vmem:[%s491] sm:$0xff]
      %v494 = vsel %vm415, %v492, 0
      %496 = vmatprep.subr.mxu0 0.0
      %497 = vmatpush1.msra.mxu0 0.0
      %498 = vmatprep.subr.mxu0 0.0
      %499 = vmatpush1.msra.mxu0 0.0
      %500 = vmatprep.subr.mxu0 0.0
      %501 = vmatpush1.msra.mxu0 0.0
      %502 = vmatprep.subr.mxu0 0.0
      %503 = vmatpush1.msra.mxu0 0.0
      %504 = vmatprep.subr.mxu0 0.0
      %505 = vmatpush1.msra.mxu0 0.0
      %506 = vmatprep.subr.mxu0 0.0
      %507 = vmatpush1.msra.mxu0 0.0
      %508 = vmatprep.subr.mxu0 0.0
      %509 = vmatpush1.msra.mxu0 0.0
      %510 = vmatprep.subr.mxu0 0.0
      %511 = vmatpush1.msra.mxu0 0.0
      %512 = vmatprep.subr.mxu0 0.0
      %513 = vmatpush1.msra.mxu0 0.0
      %514 = vmatprep.subr.mxu0 0.0
      %515 = vmatpush1.msra.mxu0 0.0
      %516 = vmatprep.subr.mxu0 0.0
      %517 = vmatpush1.msra.mxu0 0.0
      %518 = vmatprep.subr.mxu0 0.0
      %519 = vmatpush1.msra.mxu0 0.0
      %520 = vmatprep.subr.mxu0 0.0
      %521 = vmatpush1.msra.mxu0 0.0
      %522 = vmatprep.subr.mxu0 0.0
      %523 = vmatpush1.msra.mxu0 0.0
      %524 = vmatprep.subr.mxu0 0.0
      %525 = vmatpush1.msra.mxu0 %v413
      %526 = vmatprep.subr.mxu0 0.0
      %527 = vmatpush1.msra.mxu0 %v412
      %528 = vmatprep.subr.mxu0 0.0
      %529 = vmatpush2.msra.mxu0 0.0
      %530 = vmatprep.subr.mxu0 0.0
      %531 = vmatpush2.msra.mxu0 0.0
      %532 = vmatprep.subr.mxu0 0.0
      %533 = vmatpush2.msra.mxu0 0.0
      %534 = vmatprep.subr.mxu0 0.0
      %535 = vmatpush2.msra.mxu0 0.0
      %536 = vmatprep.subr.mxu0 0.0
      %537 = vmatpush2.msra.mxu0 0.0
      %538 = vmatprep.subr.mxu0 0.0
      %539 = vmatpush2.msra.mxu0 0.0
      %540 = vmatprep.subr.mxu0 0.0
      %541 = vmatpush2.msra.mxu0 0.0
      %542 = vmatprep.subr.mxu0 0.0
      %543 = vmatpush2.msra.mxu0 0.0
      %544 = vmatprep.subr.mxu0 0.0
      %545 = vmatpush2.msra.mxu0 0.0
      %546 = vmatprep.subr.mxu0 0.0
      %547 = vmatpush2.msra.mxu0 0.0
      %548 = vmatprep.subr.mxu0 0.0
      %549 = vmatpush2.msra.mxu0 0.0
      %550 = vmatprep.subr.mxu0 0.0
      %551 = vmatpush2.msra.mxu0 0.0
      %552 = vmatprep.subr.mxu0 0.0
      %553 = vmatpush2.msra.mxu0 0.0
      %554 = vmatprep.subr.mxu0 0.0
      %555 = vmatpush2.msra.mxu0 0.0
      %556 = vmatprep.subr.mxu0 0.0
      %557 = vmatpush2.msra.mxu0 0.0
      %558 = vmatprep.subr.mxu0 0.0
      %559 = vmatpush2.msra.mxu0 0.0
      %560 = vmatprep.mubr.f32.mxu0 0.0
      %561 = vmatmul.mubr.f32.gmra.mxu0 %v494
      %v562 = vpop.f32.mrf.mxu0
      %v563 = vadd.f32 0.0, %v562
      %v564 = vpop.f32.mrf.mxu0
      %565 = vdwg.mxu0
      %s566 = scalar_lea.vmem %s2, 16
      %v567 = vld [vmem:[%s566] sm:$0xff]
      %v568 = vld [vmem:[%s566 + $0x8] sm:$0xff]
      %v570 = vsel %vm415, %v563, 0
      %572 = vmatprep.subr.mxu0 0.0
      %573 = vmatpush1.msra.mxu0 0.0
      %574 = vmatprep.subr.mxu0 0.0
      %575 = vmatpush1.msra.mxu0 0.0
      %576 = vmatprep.subr.mxu0 0.0
      %577 = vmatpush1.msra.mxu0 0.0
      %578 = vmatprep.subr.mxu0 0.0
      %579 = vmatpush1.msra.mxu0 0.0
      %580 = vmatprep.subr.mxu0 0.0
      %581 = vmatpush1.msra.mxu0 0.0
      %582 = vmatprep.subr.mxu0 0.0
      %583 = vmatpush1.msra.mxu0 0.0
      %584 = vmatprep.subr.mxu0 0.0
      %585 = vmatpush1.msra.mxu0 0.0
      %586 = vmatprep.subr.mxu0 0.0
      %587 = vmatpush1.msra.mxu0 0.0
      %588 = vmatprep.subr.mxu0 0.0
      %589 = vmatpush1.msra.mxu0 0.0
      %590 = vmatprep.subr.mxu0 0.0
      %591 = vmatpush1.msra.mxu0 0.0
      %592 = vmatprep.subr.mxu0 0.0
      %593 = vmatpush1.msra.mxu0 0.0
      %594 = vmatprep.subr.mxu0 0.0
      %595 = vmatpush1.msra.mxu0 0.0
      %596 = vmatprep.subr.mxu0 0.0
      %597 = vmatpush1.msra.mxu0 0.0
      %598 = vmatprep.subr.mxu0 0.0
      %599 = vmatpush1.msra.mxu0 0.0
      %600 = vmatprep.subr.mxu0 0.0
      %601 = vmatpush1.msra.mxu0 %v568
      %602 = vmatprep.subr.mxu0 0.0
      %603 = vmatpush1.msra.mxu0 %v567
      %604 = vmatprep.subr.mxu0 0.0
      %605 = vmatpush2.msra.mxu0 0.0
      %606 = vmatprep.subr.mxu0 0.0
      %607 = vmatpush2.msra.mxu0 0.0
      %608 = vmatprep.subr.mxu0 0.0
      %609 = vmatpush2.msra.mxu0 0.0
      %610 = vmatprep.subr.mxu0 0.0
      %611 = vmatpush2.msra.mxu0 0.0
      %612 = vmatprep.subr.mxu0 0.0
      %613 = vmatpush2.msra.mxu0 0.0
      %614 = vmatprep.subr.mxu0 0.0
      %615 = vmatpush2.msra.mxu0 0.0
      %616 = vmatprep.subr.mxu0 0.0
      %617 = vmatpush2.msra.mxu0 0.0
      %618 = vmatprep.subr.mxu0 0.0
      %619 = vmatpush2.msra.mxu0 0.0
      %620 = vmatprep.subr.mxu0 0.0
      %621 = vmatpush2.msra.mxu0 0.0
      %622 = vmatprep.subr.mxu0 0.0
      %623 = vmatpush2.msra.mxu0 0.0
      %624 = vmatprep.subr.mxu0 0.0
      %625 = vmatpush2.msra.mxu0 0.0
      %626 = vmatprep.subr.mxu0 0.0
      %627 = vmatpush2.msra.mxu0 0.0
      %628 = vmatprep.subr.mxu0 0.0
      %629 = vmatpush2.msra.mxu0 0.0
      %630 = vmatprep.subr.mxu0 0.0
      %631 = vmatpush2.msra.mxu0 0.0
      %632 = vmatprep.subr.mxu0 0.0
      %633 = vmatpush2.msra.mxu0 0.0
      %634 = vmatprep.subr.mxu0 0.0
      %635 = vmatpush2.msra.mxu0 0.0
      %636 = vmatprep.mubr.f32.mxu0 0.0
      %637 = vmatmul.mubr.f32.gmra.mxu0 %v570
      %v638 = vpop.f32.mrf.mxu0
      %v639 = vadd.f32 0.0, %v638
      %v640 = vpop.f32.mrf.mxu0
      %641 = vdwg.mxu0
      %v643 = vsel %vm415, %v486, 0
      %645 = vmatprep.subr.mxu0 0.0
      %646 = vmatpush1.msra.mxu0 0.0
      %647 = vmatprep.subr.mxu0 0.0
      %648 = vmatpush1.msra.mxu0 0.0
      %649 = vmatprep.subr.mxu0 0.0
      %650 = vmatpush1.msra.mxu0 0.0
      %651 = vmatprep.subr.mxu0 0.0
      %652 = vmatpush1.msra.mxu0 0.0
      %653 = vmatprep.subr.mxu0 0.0
      %654 = vmatpush1.msra.mxu0 0.0
      %655 = vmatprep.subr.mxu0 0.0
      %656 = vmatpush1.msra.mxu0 0.0
      %657 = vmatprep.subr.mxu0 0.0
      %658 = vmatpush1.msra.mxu0 0.0
      %659 = vmatprep.subr.mxu0 0.0
      %660 = vmatpush1.msra.mxu0 0.0
      %661 = vmatprep.subr.mxu0 0.0
      %662 = vmatpush1.msra.mxu0 0.0
      %663 = vmatprep.subr.mxu0 0.0
      %664 = vmatpush1.msra.mxu0 0.0
      %665 = vmatprep.subr.mxu0 0.0
      %666 = vmatpush1.msra.mxu0 0.0
      %667 = vmatprep.subr.mxu0 0.0
      %668 = vmatpush1.msra.mxu0 0.0
      %669 = vmatprep.subr.mxu0 0.0
      %670 = vmatpush1.msra.mxu0 0.0
      %671 = vmatprep.subr.mxu0 0.0
      %672 = vmatpush1.msra.mxu0 0.0
      %673 = vmatprep.subr.mxu0 0.0
      %674 = vmatpush1.msra.mxu0 %v490
      %675 = vmatprep.subr.mxu0 0.0
      %676 = vmatpush1.msra.mxu0 %v489
      %677 = vmatprep.subr.mxu0 0.0
      %678 = vmatpush2.msra.mxu0 0.0
      %679 = vmatprep.subr.mxu0 0.0
      %680 = vmatpush2.msra.mxu0 0.0
      %681 = vmatprep.subr.mxu0 0.0
      %682 = vmatpush2.msra.mxu0 0.0
      %683 = vmatprep.subr.mxu0 0.0
      %684 = vmatpush2.msra.mxu0 0.0
      %685 = vmatprep.subr.mxu0 0.0
      %686 = vmatpush2.msra.mxu0 0.0
      %687 = vmatprep.subr.mxu0 0.0
      %688 = vmatpush2.msra.mxu0 0.0
      %689 = vmatprep.subr.mxu0 0.0
      %690 = vmatpush2.msra.mxu0 0.0
      %691 = vmatprep.subr.mxu0 0.0
      %692 = vmatpush2.msra.mxu0 0.0
      %693 = vmatprep.subr.mxu0 0.0
      %694 = vmatpush2.msra.mxu0 0.0
      %695 = vmatprep.subr.mxu0 0.0
      %696 = vmatpush2.msra.mxu0 0.0
      %697 = vmatprep.subr.mxu0 0.0
      %698 = vmatpush2.msra.mxu0 0.0
      %699 = vmatprep.subr.mxu0 0.0
      %700 = vmatpush2.msra.mxu0 0.0
      %701 = vmatprep.subr.mxu0 0.0
      %702 = vmatpush2.msra.mxu0 0.0
      %703 = vmatprep.subr.mxu0 0.0
      %704 = vmatpush2.msra.mxu0 0.0
      %705 = vmatprep.subr.mxu0 0.0
      %706 = vmatpush2.msra.mxu0 0.0
      %707 = vmatprep.subr.mxu0 0.0
      %708 = vmatpush2.msra.mxu0 0.0
      %709 = vmatprep.mubr.f32.mxu0 0.0
      %710 = vmatmul.mubr.f32.gmra.mxu0 %v643
      %v711 = vpop.f32.mrf.mxu0
      %v712 = vadd.f32 %v639, %v711
      %v713 = vpop.f32.mrf.mxu0
      %714 = vdwg.mxu0
      %s715 = scalar_lea.vmem %s1, 16
      %v716 = vld [vmem:[%s715] sm:$0xff]
      %v718 = vsel %vm415, %v716, 0
      %720 = vmatprep.subr.mxu0 0.0
      %721 = vmatpush1.msra.mxu0 0.0
      %722 = vmatprep.subr.mxu0 0.0
      %723 = vmatpush1.msra.mxu0 0.0
      %724 = vmatprep.subr.mxu0 0.0
      %725 = vmatpush1.msra.mxu0 0.0
      %726 = vmatprep.subr.mxu0 0.0
      %727 = vmatpush1.msra.mxu0 0.0
      %728 = vmatprep.subr.mxu0 0.0
      %729 = vmatpush1.msra.mxu0 0.0
      %730 = vmatprep.subr.mxu0 0.0
      %731 = vmatpush1.msra.mxu0 0.0
      %732 = vmatprep.subr.mxu0 0.0
      %733 = vmatpush1.msra.mxu0 0.0
      %734 = vmatprep.subr.mxu0 0.0
      %735 = vmatpush1.msra.mxu0 0.0
      %736 = vmatprep.subr.mxu0 0.0
      %737 = vmatpush1.msra.mxu0 0.0
      %738 = vmatprep.subr.mxu0 0.0
      %739 = vmatpush1.msra.mxu0 0.0
      %740 = vmatprep.subr.mxu0 0.0
      %741 = vmatpush1.msra.mxu0 0.0
      %742 = vmatprep.subr.mxu0 0.0
      %743 = vmatpush1.msra.mxu0 0.0
      %744 = vmatprep.subr.mxu0 0.0
      %745 = vmatpush1.msra.mxu0 0.0
      %746 = vmatprep.subr.mxu0 0.0
      %747 = vmatpush1.msra.mxu0 0.0
      %748 = vmatprep.subr.mxu0 0.0
      %749 = vmatpush1.msra.mxu0 %v413
      %750 = vmatprep.subr.mxu0 0.0
      %751 = vmatpush1.msra.mxu0 %v412
      %752 = vmatprep.subr.mxu0 0.0
      %753 = vmatpush2.msra.mxu0 0.0
      %754 = vmatprep.subr.mxu0 0.0
      %755 = vmatpush2.msra.mxu0 0.0
      %756 = vmatprep.subr.mxu0 0.0
      %757 = vmatpush2.msra.mxu0 0.0
      %758 = vmatprep.subr.mxu0 0.0
      %759 = vmatpush2.msra.mxu0 0.0
      %760 = vmatprep.subr.mxu0 0.0
      %761 = vmatpush2.msra.mxu0 0.0
      %762 = vmatprep.subr.mxu0 0.0
      %763 = vmatpush2.msra.mxu0 0.0
      %764 = vmatprep.subr.mxu0 0.0
      %765 = vmatpush2.msra.mxu0 0.0
      %766 = vmatprep.subr.mxu0 0.0
      %767 = vmatpush2.msra.mxu0 0.0
      %768 = vmatprep.subr.mxu0 0.0
      %769 = vmatpush2.msra.mxu0 0.0
      %770 = vmatprep.subr.mxu0 0.0
      %771 = vmatpush2.msra.mxu0 0.0
      %772 = vmatprep.subr.mxu0 0.0
      %773 = vmatpush2.msra.mxu0 0.0
      %774 = vmatprep.subr.mxu0 0.0
      %775 = vmatpush2.msra.mxu0 0.0
      %776 = vmatprep.subr.mxu0 0.0
      %777 = vmatpush2.msra.mxu0 0.0
      %778 = vmatprep.subr.mxu0 0.0
      %779 = vmatpush2.msra.mxu0 0.0
      %780 = vmatprep.subr.mxu0 0.0
      %781 = vmatpush2.msra.mxu0 0.0
      %782 = vmatprep.subr.mxu0 0.0
      %783 = vmatpush2.msra.mxu0 0.0
      %784 = vmatprep.mubr.f32.mxu0 0.0
      %785 = vmatmul.mubr.f32.gmra.mxu0 %v718
      %v786 = vpop.f32.mrf.mxu0
      %v787 = vadd.f32 0.0, %v786
      %v788 = vpop.f32.mrf.mxu0
      %789 = vdwg.mxu0
      %s790 = scalar_lea.vmem %s2, 32
      %v791 = vld [vmem:[%s790] sm:$0xff]
      %v792 = vld [vmem:[%s790 + $0x8] sm:$0xff]
      %v794 = vsel %vm415, %v787, 0
      %796 = vmatprep.subr.mxu0 0.0
      %797 = vmatpush1.msra.mxu0 0.0
      %798 = vmatprep.subr.mxu0 0.0
      %799 = vmatpush1.msra.mxu0 0.0
      %800 = vmatprep.subr.mxu0 0.0
      %801 = vmatpush1.msra.mxu0 0.0
      %802 = vmatprep.subr.mxu0 0.0
      %803 = vmatpush1.msra.mxu0 0.0
      %804 = vmatprep.subr.mxu0 0.0
      %805 = vmatpush1.msra.mxu0 0.0
      %806 = vmatprep.subr.mxu0 0.0
      %807 = vmatpush1.msra.mxu0 0.0
      %808 = vmatprep.subr.mxu0 0.0
      %809 = vmatpush1.msra.mxu0 0.0
      %810 = vmatprep.subr.mxu0 0.0
      %811 = vmatpush1.msra.mxu0 0.0
      %812 = vmatprep.subr.mxu0 0.0
      %813 = vmatpush1.msra.mxu0 0.0
      %814 = vmatprep.subr.mxu0 0.0
      %815 = vmatpush1.msra.mxu0 0.0
      %816 = vmatprep.subr.mxu0 0.0
      %817 = vmatpush1.msra.mxu0 0.0
      %818 = vmatprep.subr.mxu0 0.0
      %819 = vmatpush1.msra.mxu0 0.0
      %820 = vmatprep.subr.mxu0 0.0
      %821 = vmatpush1.msra.mxu0 0.0
      %822 = vmatprep.subr.mxu0 0.0
      %823 = vmatpush1.msra.mxu0 0.0
      %824 = vmatprep.subr.mxu0 0.0
      %825 = vmatpush1.msra.mxu0 %v792
      %826 = vmatprep.subr.mxu0 0.0
      %827 = vmatpush1.msra.mxu0 %v791
      %828 = vmatprep.subr.mxu0 0.0
      %829 = vmatpush2.msra.mxu0 0.0
      %830 = vmatprep.subr.mxu0 0.0
      %831 = vmatpush2.msra.mxu0 0.0
      %832 = vmatprep.subr.mxu0 0.0
      %833 = vmatpush2.msra.mxu0 0.0
      %834 = vmatprep.subr.mxu0 0.0
      %835 = vmatpush2.msra.mxu0 0.0
      %836 = vmatprep.subr.mxu0 0.0
      %837 = vmatpush2.msra.mxu0 0.0
      %838 = vmatprep.subr.mxu0 0.0
      %839 = vmatpush2.msra.mxu0 0.0
      %840 = vmatprep.subr.mxu0 0.0
      %841 = vmatpush2.msra.mxu0 0.0
      %842 = vmatprep.subr.mxu0 0.0
      %843 = vmatpush2.msra.mxu0 0.0
      %844 = vmatprep.subr.mxu0 0.0
      %845 = vmatpush2.msra.mxu0 0.0
      %846 = vmatprep.subr.mxu0 0.0
      %847 = vmatpush2.msra.mxu0 0.0
      %848 = vmatprep.subr.mxu0 0.0
      %849 = vmatpush2.msra.mxu0 0.0
      %850 = vmatprep.subr.mxu0 0.0
      %851 = vmatpush2.msra.mxu0 0.0
      %852 = vmatprep.subr.mxu0 0.0
      %853 = vmatpush2.msra.mxu0 0.0
      %854 = vmatprep.subr.mxu0 0.0
      %855 = vmatpush2.msra.mxu0 0.0
      %856 = vmatprep.subr.mxu0 0.0
      %857 = vmatpush2.msra.mxu0 0.0
      %858 = vmatprep.subr.mxu0 0.0
      %859 = vmatpush2.msra.mxu0 0.0
      %860 = vmatprep.mubr.f32.mxu0 0.0
      %861 = vmatmul.mubr.f32.gmra.mxu0 %v794
      %v862 = vpop.f32.mrf.mxu0
      %v863 = vadd.f32 0.0, %v862
      %v864 = vpop.f32.mrf.mxu0
      %865 = vdwg.mxu0
      %v866 = vadd.f32 %v712, %v863
      %v867 = vld [vmem:[%s3] sm:$0x1]
      %v869 = vlaneseq
      %v870 = vshrl.u32 %v869, 7
      %v871 = vsub.s32 0, %v870
      %v872 = vrot.slane %v867, %v871
      %v874 = vadd.f32 %v866, %v872
      %v875 = vmax.f32 %v874, 0.0
      %v876 = vld [vmem:[%s4] sm:$0xf]
      %s877 = scalar_lea.vmem %s4, 4
      %v878 = vld [vmem:[%s877] sm:$0xf]
      %v879 = vld [vmem:[%s5] sm:$0xff]
      %v880 = vld [vmem:[%s5 + $0x8] sm:$0xff]
      %v881 = vld [vmem:[%s5 + $0x10] sm:$0xff]
      %v882 = vld [vmem:[%s5 + $0x18] sm:$0xff]
      %v883 = vld [vmem:[%s5 + $0x20] sm:$0xff]
      %v884 = vld [vmem:[%s5 + $0x28] sm:$0xff]
      %v885 = vld [vmem:[%s5 + $0x30] sm:$0xff]
      %v886 = vld [vmem:[%s5 + $0x38] sm:$0xff]
      %v887 = vld [vmem:[%s5 + $0x40] sm:$0xff]
      %v888 = vld [vmem:[%s5 + $0x48] sm:$0xff]
      %v889 = vld [vmem:[%s5 + $0x50] sm:$0xff]
      %v890 = vld [vmem:[%s5 + $0x58] sm:$0xff]
      %v891 = vld [vmem:[%s5 + $0x60] sm:$0xff]
      %v892 = vld [vmem:[%s5 + $0x68] sm:$0xff]
      %v893 = vld [vmem:[%s5 + $0x70] sm:$0xff]
      %v894 = vld [vmem:[%s5 + $0x78] sm:$0xff]
      %s895 = scalar_lea.vmem %s5, 128
      %v896 = vld [vmem:[%s895] sm:$0xff]
      %v897 = vld [vmem:[%s895 + $0x8] sm:$0xff]
      %v898 = vld [vmem:[%s895 + $0x10] sm:$0xff]
      %v899 = vld [vmem:[%s895 + $0x18] sm:$0xff]
      %v900 = vld [vmem:[%s895 + $0x20] sm:$0xff]
      %v901 = vld [vmem:[%s895 + $0x28] sm:$0xff]
      %v902 = vld [vmem:[%s895 + $0x30] sm:$0xff]
      %v903 = vld [vmem:[%s895 + $0x38] sm:$0xff]
      %v904 = vld [vmem:[%s895 + $0x40] sm:$0xff]
      %v905 = vld [vmem:[%s895 + $0x48] sm:$0xff]
      %v906 = vld [vmem:[%s895 + $0x50] sm:$0xff]
      %v907 = vld [vmem:[%s895 + $0x58] sm:$0xff]
      %v908 = vld [vmem:[%s895 + $0x60] sm:$0xff]
      %v909 = vld [vmem:[%s895 + $0x68] sm:$0xff]
      %v910 = vld [vmem:[%s895 + $0x70] sm:$0xff]
      %v911 = vld [vmem:[%s895 + $0x78] sm:$0xff]
      %vm912 = vcmask 64512
      %v914 = vsel %vm912, %v876, 0
      %916 = vmatprep.subr.mxu0 0.0
      %917 = vmatpush1.msra.mxu0 0.0
      %918 = vmatprep.subr.mxu0 0.0
      %919 = vmatpush1.msra.mxu0 0.0
      %920 = vmatprep.subr.mxu0 0.0
      %921 = vmatpush1.msra.mxu0 0.0
      %922 = vmatprep.subr.mxu0 0.0
      %923 = vmatpush1.msra.mxu0 0.0
      %924 = vmatprep.subr.mxu0 0.0
      %925 = vmatpush1.msra.mxu0 0.0
      %926 = vmatprep.subr.mxu0 0.0
      %927 = vmatpush1.msra.mxu0 0.0
      %928 = vmatprep.subr.mxu0 0.0
      %929 = vmatpush1.msra.mxu0 0.0
      %930 = vmatprep.subr.mxu0 0.0
      %931 = vmatpush1.msra.mxu0 0.0
      %932 = vmatprep.subr.mxu0 0.0
      %933 = vmatpush1.msra.mxu0 0.0
      %934 = vmatprep.subr.mxu0 0.0
      %935 = vmatpush1.msra.mxu0 0.0
      %936 = vmatprep.subr.mxu0 0.0
      %937 = vmatpush1.msra.mxu0 0.0
      %938 = vmatprep.subr.mxu0 0.0
      %939 = vmatpush1.msra.mxu0 0.0
      %940 = vmatprep.subr.mxu0 0.0
      %941 = vmatpush1.msra.mxu0 0.0
      %942 = vmatprep.subr.mxu0 0.0
      %943 = vmatpush1.msra.mxu0 0.0
      %944 = vmatprep.subr.mxu0 0.0
      %945 = vmatpush1.msra.mxu0 0.0
      %946 = vmatprep.subr.mxu0 0.0
      %947 = vmatpush1.msra.mxu0 %v875
      %948 = vmatprep.subr.mxu0 0.0
      %949 = vmatpush2.msra.mxu0 0.0
      %950 = vmatprep.subr.mxu0 0.0
      %951 = vmatpush2.msra.mxu0 0.0
      %952 = vmatprep.subr.mxu0 0.0
      %953 = vmatpush2.msra.mxu0 0.0
      %954 = vmatprep.subr.mxu0 0.0
      %955 = vmatpush2.msra.mxu0 0.0
      %956 = vmatprep.subr.mxu0 0.0
      %957 = vmatpush2.msra.mxu0 0.0
      %958 = vmatprep.subr.mxu0 0.0
      %959 = vmatpush2.msra.mxu0 0.0
      %960 = vmatprep.subr.mxu0 0.0
      %961 = vmatpush2.msra.mxu0 0.0
      %962 = vmatprep.subr.mxu0 0.0
      %963 = vmatpush2.msra.mxu0 0.0
      %964 = vmatprep.subr.mxu0 0.0
      %965 = vmatpush2.msra.mxu0 0.0
      %966 = vmatprep.subr.mxu0 0.0
      %967 = vmatpush2.msra.mxu0 0.0
      %968 = vmatprep.subr.mxu0 0.0
      %969 = vmatpush2.msra.mxu0 0.0
      %970 = vmatprep.subr.mxu0 0.0
      %971 = vmatpush2.msra.mxu0 0.0
      %972 = vmatprep.subr.mxu0 0.0
      %973 = vmatpush2.msra.mxu0 0.0
      %974 = vmatprep.subr.mxu0 0.0
      %975 = vmatpush2.msra.mxu0 0.0
      %976 = vmatprep.subr.mxu0 0.0
      %977 = vmatpush2.msra.mxu0 0.0
      %978 = vmatprep.subr.mxu0 0.0
      %979 = vmatpush2.msra.mxu0 0.0
      %980 = vmatprep.mubr.f32.mxu0 0.0
      %981 = vmatmul.mubr.f32.gmra.mxu0 %v914
      %v982 = vpop.f32.mrf.mxu0
      %v983 = vadd.f32 0.0, %v982
      %v984 = vpop.f32.mrf.mxu0
      %985 = vdwg.mxu0
      %v987 = vsel %vm912, %v878, 0
      %989 = vmatprep.subr.mxu0 0.0
      %990 = vmatpush1.msra.mxu0 0.0
      %991 = vmatprep.subr.mxu0 0.0
      %992 = vmatpush1.msra.mxu0 0.0
      %993 = vmatprep.subr.mxu0 0.0
      %994 = vmatpush1.msra.mxu0 0.0
      %995 = vmatprep.subr.mxu0 0.0
      %996 = vmatpush1.msra.mxu0 0.0
      %997 = vmatprep.subr.mxu0 0.0
      %998 = vmatpush1.msra.mxu0 0.0
      %999 = vmatprep.subr.mxu0 0.0
      %1000 = vmatpush1.msra.mxu0 0.0
      %1001 = vmatprep.subr.mxu0 0.0
      %1002 = vmatpush1.msra.mxu0 0.0
      %1003 = vmatprep.subr.mxu0 0.0
      %1004 = vmatpush1.msra.mxu0 0.0
      %1005 = vmatprep.subr.mxu0 0.0
      %1006 = vmatpush1.msra.mxu0 0.0
      %1007 = vmatprep.subr.mxu0 0.0
      %1008 = vmatpush1.msra.mxu0 0.0
      %1009 = vmatprep.subr.mxu0 0.0
      %1010 = vmatpush1.msra.mxu0 0.0
      %1011 = vmatprep.subr.mxu0 0.0
      %1012 = vmatpush1.msra.mxu0 0.0
      %1013 = vmatprep.subr.mxu0 0.0
      %1014 = vmatpush1.msra.mxu0 0.0
      %1015 = vmatprep.subr.mxu0 0.0
      %1016 = vmatpush1.msra.mxu0 0.0
      %1017 = vmatprep.subr.mxu0 0.0
      %1018 = vmatpush1.msra.mxu0 0.0
      %1019 = vmatprep.subr.mxu0 0.0
      %1020 = vmatpush1.msra.mxu0 %v875
      %1021 = vmatprep.subr.mxu0 0.0
      %1022 = vmatpush2.msra.mxu0 0.0
      %1023 = vmatprep.subr.mxu0 0.0
      %1024 = vmatpush2.msra.mxu0 0.0
      %1025 = vmatprep.subr.mxu0 0.0
      %1026 = vmatpush2.msra.mxu0 0.0
      %1027 = vmatprep.subr.mxu0 0.0
      %1028 = vmatpush2.msra.mxu0 0.0
      %1029 = vmatprep.subr.mxu0 0.0
      %1030 = vmatpush2.msra.mxu0 0.0
      %1031 = vmatprep.subr.mxu0 0.0
      %1032 = vmatpush2.msra.mxu0 0.0
      %1033 = vmatprep.subr.mxu0 0.0
      %1034 = vmatpush2.msra.mxu0 0.0
      %1035 = vmatprep.subr.mxu0 0.0
      %1036 = vmatpush2.msra.mxu0 0.0
      %1037 = vmatprep.subr.mxu0 0.0
      %1038 = vmatpush2.msra.mxu0 0.0
      %1039 = vmatprep.subr.mxu0 0.0
      %1040 = vmatpush2.msra.mxu0 0.0
      %1041 = vmatprep.subr.mxu0 0.0
      %1042 = vmatpush2.msra.mxu0 0.0
      %1043 = vmatprep.subr.mxu0 0.0
      %1044 = vmatpush2.msra.mxu0 0.0
      %1045 = vmatprep.subr.mxu0 0.0
      %1046 = vmatpush2.msra.mxu0 0.0
      %1047 = vmatprep.subr.mxu0 0.0
      %1048 = vmatpush2.msra.mxu0 0.0
      %1049 = vmatprep.subr.mxu0 0.0
      %1050 = vmatpush2.msra.mxu0 0.0
      %1051 = vmatprep.subr.mxu0 0.0
      %1052 = vmatpush2.msra.mxu0 0.0
      %1053 = vmatprep.mubr.f32.mxu0 0.0
      %1054 = vmatmul.mubr.f32.gmra.mxu0 %v987
      %v1055 = vpop.f32.mrf.mxu0
      %v1056 = vadd.f32 0.0, %v1055
      %v1057 = vpop.f32.mrf.mxu0
      %1058 = vdwg.mxu0
      %1059 = vmatprep.subr.mxu0 0.0
      %1060 = vmatpush1.msra.mxu0 %v894
      %1061 = vmatprep.subr.mxu0 0.0
      %1062 = vmatpush1.msra.mxu0 %v893
      %1063 = vmatprep.subr.mxu0 0.0
      %1064 = vmatpush1.msra.mxu0 %v892
      %1065 = vmatprep.subr.mxu0 0.0
      %1066 = vmatpush1.msra.mxu0 %v891
      %1067 = vmatprep.subr.mxu0 0.0
      %1068 = vmatpush1.msra.mxu0 %v890
      %1069 = vmatprep.subr.mxu0 0.0
      %1070 = vmatpush1.msra.mxu0 %v889
      %1071 = vmatprep.subr.mxu0 0.0
      %1072 = vmatpush1.msra.mxu0 %v888
      %1073 = vmatprep.subr.mxu0 0.0
      %1074 = vmatpush1.msra.mxu0 %v887
      %1075 = vmatprep.subr.mxu0 0.0
      %1076 = vmatpush1.msra.mxu0 %v886
      %1077 = vmatprep.subr.mxu0 0.0
      %1078 = vmatpush1.msra.mxu0 %v885
      %1079 = vmatprep.subr.mxu0 0.0
      %1080 = vmatpush1.msra.mxu0 %v884
      %1081 = vmatprep.subr.mxu0 0.0
      %1082 = vmatpush1.msra.mxu0 %v883
      %1083 = vmatprep.subr.mxu0 0.0
      %1084 = vmatpush1.msra.mxu0 %v882
      %1085 = vmatprep.subr.mxu0 0.0
      %1086 = vmatpush1.msra.mxu0 %v881
      %1087 = vmatprep.subr.mxu0 0.0
      %1088 = vmatpush1.msra.mxu0 %v880
      %1089 = vmatprep.subr.mxu0 0.0
      %1090 = vmatpush1.msra.mxu0 %v879
      %1091 = vmatprep.subr.mxu0 0.0
      %1092 = vmatpush2.msra.mxu0 0.0
      %1093 = vmatprep.subr.mxu0 0.0
      %1094 = vmatpush2.msra.mxu0 0.0
      %1095 = vmatprep.subr.mxu0 0.0
      %1096 = vmatpush2.msra.mxu0 0.0
      %1097 = vmatprep.subr.mxu0 0.0
      %1098 = vmatpush2.msra.mxu0 0.0
      %1099 = vmatprep.subr.mxu0 0.0
      %1100 = vmatpush2.msra.mxu0 0.0
      %1101 = vmatprep.subr.mxu0 0.0
      %1102 = vmatpush2.msra.mxu0 0.0
      %1103 = vmatprep.subr.mxu0 0.0
      %1104 = vmatpush2.msra.mxu0 0.0
      %1105 = vmatprep.subr.mxu0 0.0
      %1106 = vmatpush2.msra.mxu0 0.0
      %1107 = vmatprep.subr.mxu0 0.0
      %1108 = vmatpush2.msra.mxu0 0.0
      %1109 = vmatprep.subr.mxu0 0.0
      %1110 = vmatpush2.msra.mxu0 0.0
      %1111 = vmatprep.subr.mxu0 0.0
      %1112 = vmatpush2.msra.mxu0 0.0
      %1113 = vmatprep.subr.mxu0 0.0
      %1114 = vmatpush2.msra.mxu0 0.0
      %1115 = vmatprep.subr.mxu0 0.0
      %1116 = vmatpush2.msra.mxu0 0.0
      %1117 = vmatprep.subr.mxu0 0.0
      %1118 = vmatpush2.msra.mxu0 0.0
      %1119 = vmatprep.subr.mxu0 0.0
      %1120 = vmatpush2.msra.mxu0 0.0
      %1121 = vmatprep.subr.mxu0 0.0
      %1122 = vmatpush2.msra.mxu0 0.0
      %1123 = vmatprep.mubr.f32.mxu0 0.0
      %1124 = vmatmul.mubr.f32.gmra.mxu0 %v983
      %v1125 = vpop.f32.mrf.mxu0
      %v1126 = vadd.f32 0.0, %v1125
      %v1127 = vpop.f32.mrf.mxu0
      %1128 = vdwg.mxu0
      %1129 = vmatprep.subr.mxu0 0.0
      %1130 = vmatpush1.msra.mxu0 %v911
      %1131 = vmatprep.subr.mxu0 0.0
      %1132 = vmatpush1.msra.mxu0 %v910
      %1133 = vmatprep.subr.mxu0 0.0
      %1134 = vmatpush1.msra.mxu0 %v909
      %1135 = vmatprep.subr.mxu0 0.0
      %1136 = vmatpush1.msra.mxu0 %v908
      %1137 = vmatprep.subr.mxu0 0.0
      %1138 = vmatpush1.msra.mxu0 %v907
      %1139 = vmatprep.subr.mxu0 0.0
      %1140 = vmatpush1.msra.mxu0 %v906
      %1141 = vmatprep.subr.mxu0 0.0
      %1142 = vmatpush1.msra.mxu0 %v905
      %1143 = vmatprep.subr.mxu0 0.0
      %1144 = vmatpush1.msra.mxu0 %v904
      %1145 = vmatprep.subr.mxu0 0.0
      %1146 = vmatpush1.msra.mxu0 %v903
      %1147 = vmatprep.subr.mxu0 0.0
      %1148 = vmatpush1.msra.mxu0 %v902
      %1149 = vmatprep.subr.mxu0 0.0
      %1150 = vmatpush1.msra.mxu0 %v901
      %1151 = vmatprep.subr.mxu0 0.0
      %1152 = vmatpush1.msra.mxu0 %v900
      %1153 = vmatprep.subr.mxu0 0.0
      %1154 = vmatpush1.msra.mxu0 %v899
      %1155 = vmatprep.subr.mxu0 0.0
      %1156 = vmatpush1.msra.mxu0 %v898
      %1157 = vmatprep.subr.mxu0 0.0
      %1158 = vmatpush1.msra.mxu0 %v897
      %1159 = vmatprep.subr.mxu0 0.0
      %1160 = vmatpush1.msra.mxu0 %v896
      %1161 = vmatprep.subr.mxu0 0.0
      %1162 = vmatpush2.msra.mxu0 0.0
      %1163 = vmatprep.subr.mxu0 0.0
      %1164 = vmatpush2.msra.mxu0 0.0
      %1165 = vmatprep.subr.mxu0 0.0
      %1166 = vmatpush2.msra.mxu0 0.0
      %1167 = vmatprep.subr.mxu0 0.0
      %1168 = vmatpush2.msra.mxu0 0.0
      %1169 = vmatprep.subr.mxu0 0.0
      %1170 = vmatpush2.msra.mxu0 0.0
      %1171 = vmatprep.subr.mxu0 0.0
      %1172 = vmatpush2.msra.mxu0 0.0
      %1173 = vmatprep.subr.mxu0 0.0
      %1174 = vmatpush2.msra.mxu0 0.0
      %1175 = vmatprep.subr.mxu0 0.0
      %1176 = vmatpush2.msra.mxu0 0.0
      %1177 = vmatprep.subr.mxu0 0.0
      %1178 = vmatpush2.msra.mxu0 0.0
      %1179 = vmatprep.subr.mxu0 0.0
      %1180 = vmatpush2.msra.mxu0 0.0
      %1181 = vmatprep.subr.mxu0 0.0
      %1182 = vmatpush2.msra.mxu0 0.0
      %1183 = vmatprep.subr.mxu0 0.0
      %1184 = vmatpush2.msra.mxu0 0.0
      %1185 = vmatprep.subr.mxu0 0.0
      %1186 = vmatpush2.msra.mxu0 0.0
      %1187 = vmatprep.subr.mxu0 0.0
      %1188 = vmatpush2.msra.mxu0 0.0
      %1189 = vmatprep.subr.mxu0 0.0
      %1190 = vmatpush2.msra.mxu0 0.0
      %1191 = vmatprep.subr.mxu0 0.0
      %1192 = vmatpush2.msra.mxu0 0.0
      %1193 = vmatprep.mubr.f32.mxu0 0.0
      %1194 = vmatmul.mubr.f32.gmra.mxu0 %v983
      %v1195 = vpop.f32.mrf.mxu0
      %v1196 = vadd.f32 0.0, %v1195
      %v1197 = vpop.f32.mrf.mxu0
      %1198 = vdwg.mxu0
      %1199 = vmatprep.subr.mxu0 0.0
      %1200 = vmatpush1.msra.mxu0 %v894
      %1201 = vmatprep.subr.mxu0 0.0
      %1202 = vmatpush1.msra.mxu0 %v893
      %1203 = vmatprep.subr.mxu0 0.0
      %1204 = vmatpush1.msra.mxu0 %v892
      %1205 = vmatprep.subr.mxu0 0.0
      %1206 = vmatpush1.msra.mxu0 %v891
      %1207 = vmatprep.subr.mxu0 0.0
      %1208 = vmatpush1.msra.mxu0 %v890
      %1209 = vmatprep.subr.mxu0 0.0
      %1210 = vmatpush1.msra.mxu0 %v889
      %1211 = vmatprep.subr.mxu0 0.0
      %1212 = vmatpush1.msra.mxu0 %v888
      %1213 = vmatprep.subr.mxu0 0.0
      %1214 = vmatpush1.msra.mxu0 %v887
      %1215 = vmatprep.subr.mxu0 0.0
      %1216 = vmatpush1.msra.mxu0 %v886
      %1217 = vmatprep.subr.mxu0 0.0
      %1218 = vmatpush1.msra.mxu0 %v885
      %1219 = vmatprep.subr.mxu0 0.0
      %1220 = vmatpush1.msra.mxu0 %v884
      %1221 = vmatprep.subr.mxu0 0.0
      %1222 = vmatpush1.msra.mxu0 %v883
      %1223 = vmatprep.subr.mxu0 0.0
      %1224 = vmatpush1.msra.mxu0 %v882
      %1225 = vmatprep.subr.mxu0 0.0
      %1226 = vmatpush1.msra.mxu0 %v881
      %1227 = vmatprep.subr.mxu0 0.0
      %1228 = vmatpush1.msra.mxu0 %v880
      %1229 = vmatprep.subr.mxu0 0.0
      %1230 = vmatpush1.msra.mxu0 %v879
      %1231 = vmatprep.subr.mxu0 0.0
      %1232 = vmatpush2.msra.mxu0 0.0
      %1233 = vmatprep.subr.mxu0 0.0
      %1234 = vmatpush2.msra.mxu0 0.0
      %1235 = vmatprep.subr.mxu0 0.0
      %1236 = vmatpush2.msra.mxu0 0.0
      %1237 = vmatprep.subr.mxu0 0.0
      %1238 = vmatpush2.msra.mxu0 0.0
      %1239 = vmatprep.subr.mxu0 0.0
      %1240 = vmatpush2.msra.mxu0 0.0
      %1241 = vmatprep.subr.mxu0 0.0
      %1242 = vmatpush2.msra.mxu0 0.0
      %1243 = vmatprep.subr.mxu0 0.0
      %1244 = vmatpush2.msra.mxu0 0.0
      %1245 = vmatprep.subr.mxu0 0.0
      %1246 = vmatpush2.msra.mxu0 0.0
      %1247 = vmatprep.subr.mxu0 0.0
      %1248 = vmatpush2.msra.mxu0 0.0
      %1249 = vmatprep.subr.mxu0 0.0
      %1250 = vmatpush2.msra.mxu0 0.0
      %1251 = vmatprep.subr.mxu0 0.0
      %1252 = vmatpush2.msra.mxu0 0.0
      %1253 = vmatprep.subr.mxu0 0.0
      %1254 = vmatpush2.msra.mxu0 0.0
      %1255 = vmatprep.subr.mxu0 0.0
      %1256 = vmatpush2.msra.mxu0 0.0
      %1257 = vmatprep.subr.mxu0 0.0
      %1258 = vmatpush2.msra.mxu0 0.0
      %1259 = vmatprep.subr.mxu0 0.0
      %1260 = vmatpush2.msra.mxu0 0.0
      %1261 = vmatprep.subr.mxu0 0.0
      %1262 = vmatpush2.msra.mxu0 0.0
      %1263 = vmatprep.mubr.f32.mxu0 0.0
      %1264 = vmatmul.mubr.f32.gmra.mxu0 %v1056
      %v1265 = vpop.f32.mrf.mxu0
      %v1266 = vadd.f32 0.0, %v1265
      %v1267 = vpop.f32.mrf.mxu0
      %1268 = vdwg.mxu0
      %1269 = vmatprep.subr.mxu0 0.0
      %1270 = vmatpush1.msra.mxu0 %v911
      %1271 = vmatprep.subr.mxu0 0.0
      %1272 = vmatpush1.msra.mxu0 %v910
      %1273 = vmatprep.subr.mxu0 0.0
      %1274 = vmatpush1.msra.mxu0 %v909
      %1275 = vmatprep.subr.mxu0 0.0
      %1276 = vmatpush1.msra.mxu0 %v908
      %1277 = vmatprep.subr.mxu0 0.0
      %1278 = vmatpush1.msra.mxu0 %v907
      %1279 = vmatprep.subr.mxu0 0.0
      %1280 = vmatpush1.msra.mxu0 %v906
      %1281 = vmatprep.subr.mxu0 0.0
      %1282 = vmatpush1.msra.mxu0 %v905
      %1283 = vmatprep.subr.mxu0 0.0
      %1284 = vmatpush1.msra.mxu0 %v904
      %1285 = vmatprep.subr.mxu0 0.0
      %1286 = vmatpush1.msra.mxu0 %v903
      %1287 = vmatprep.subr.mxu0 0.0
      %1288 = vmatpush1.msra.mxu0 %v902
      %1289 = vmatprep.subr.mxu0 0.0
      %1290 = vmatpush1.msra.mxu0 %v901
      %1291 = vmatprep.subr.mxu0 0.0
      %1292 = vmatpush1.msra.mxu0 %v900
      %1293 = vmatprep.subr.mxu0 0.0
      %1294 = vmatpush1.msra.mxu0 %v899
      %1295 = vmatprep.subr.mxu0 0.0
      %1296 = vmatpush1.msra.mxu0 %v898
      %1297 = vmatprep.subr.mxu0 0.0
      %1298 = vmatpush1.msra.mxu0 %v897
      %1299 = vmatprep.subr.mxu0 0.0
      %1300 = vmatpush1.msra.mxu0 %v896
      %1301 = vmatprep.subr.mxu0 0.0
      %1302 = vmatpush2.msra.mxu0 0.0
      %1303 = vmatprep.subr.mxu0 0.0
      %1304 = vmatpush2.msra.mxu0 0.0
      %1305 = vmatprep.subr.mxu0 0.0
      %1306 = vmatpush2.msra.mxu0 0.0
      %1307 = vmatprep.subr.mxu0 0.0
      %1308 = vmatpush2.msra.mxu0 0.0
      %1309 = vmatprep.subr.mxu0 0.0
      %1310 = vmatpush2.msra.mxu0 0.0
      %1311 = vmatprep.subr.mxu0 0.0
      %1312 = vmatpush2.msra.mxu0 0.0
      %1313 = vmatprep.subr.mxu0 0.0
      %1314 = vmatpush2.msra.mxu0 0.0
      %1315 = vmatprep.subr.mxu0 0.0
      %1316 = vmatpush2.msra.mxu0 0.0
      %1317 = vmatprep.subr.mxu0 0.0
      %1318 = vmatpush2.msra.mxu0 0.0
      %1319 = vmatprep.subr.mxu0 0.0
      %1320 = vmatpush2.msra.mxu0 0.0
      %1321 = vmatprep.subr.mxu0 0.0
      %1322 = vmatpush2.msra.mxu0 0.0
      %1323 = vmatprep.subr.mxu0 0.0
      %1324 = vmatpush2.msra.mxu0 0.0
      %1325 = vmatprep.subr.mxu0 0.0
      %1326 = vmatpush2.msra.mxu0 0.0
      %1327 = vmatprep.subr.mxu0 0.0
      %1328 = vmatpush2.msra.mxu0 0.0
      %1329 = vmatprep.subr.mxu0 0.0
      %1330 = vmatpush2.msra.mxu0 0.0
      %1331 = vmatprep.subr.mxu0 0.0
      %1332 = vmatpush2.msra.mxu0 0.0
      %1333 = vmatprep.mubr.f32.mxu0 0.0
      %1334 = vmatmul.mubr.f32.gmra.mxu0 %v1056
      %v1335 = vpop.f32.mrf.mxu0
      %v1336 = vadd.f32 0.0, %v1335
      %v1337 = vpop.f32.mrf.mxu0
      %1338 = vdwg.mxu0
      %v1339 = vmax.f32 %v1126, %v1196
      %v1340 = vmax.f32 %v1266, %v1336
      %v1341 = vmax.f32 %v1339, %v1340
      %vm1342 = vcmp.eq.f32.partialorder %v1126, %v1341
      %vm1343 = vcmp.eq.f32.partialorder %v1196, %v1341
      %vm1344 = vmxor %vm1342, 1
      %vm1345 = vmand %vm1343, %vm1344
      %vm1346 = vmor %vm1342, %vm1345
      %vm1347 = vcmp.eq.f32.partialorder %v1266, %v1341
      %vm1348 = vmxor %vm1346, 1
      %vm1349 = vmand %vm1347, %vm1348
      %vm1350 = vmor %vm1346, %vm1349
      %vm1351 = vcmp.eq.f32.partialorder %v1336, %v1341
      %vm1352 = vmxor %vm1350, 1
      %vm1353 = vmand %vm1351, %vm1352
      %v1354 = vsel %vm1342, %v1126, 0.0
      %v1355 = vsel %vm1345, %v1196, 0.0
      %v1356 = vsel %vm1349, %v1266, 0.0
      %v1357 = vsel %vm1353, %v1336, 0.0
      %v1358 = vld [vmem:[%s6] sm:$0xff]
      %v1359 = vld [vmem:[%s6 + $0x8] sm:$0xff]
      %v1360 = vld [vmem:[%s6 + $0x10] sm:$0xff]
      %v1361 = vld [vmem:[%s6 + $0x18] sm:$0xff]
      %v1362 = vld [vmem:[%s6 + $0x20] sm:$0xff]
      %v1363 = vld [vmem:[%s6 + $0x28] sm:$0xff]
      %v1364 = vld [vmem:[%s6 + $0x30] sm:$0xff]
      %v1365 = vld [vmem:[%s6 + $0x38] sm:$0xff]
      %s1366 = scalar_lea.vmem %s6, 64
      %v1367 = vld [vmem:[%s1366] sm:$0xff]
      %v1368 = vld [vmem:[%s1366 + $0x8] sm:$0xff]
      %v1369 = vld [vmem:[%s1366 + $0x10] sm:$0xff]
      %v1370 = vld [vmem:[%s1366 + $0x18] sm:$0xff]
      %v1371 = vld [vmem:[%s1366 + $0x20] sm:$0xff]
      %v1372 = vld [vmem:[%s1366 + $0x28] sm:$0xff]
      %v1373 = vld [vmem:[%s1366 + $0x30] sm:$0xff]
      %v1374 = vld [vmem:[%s1366 + $0x38] sm:$0xff]
      %v1375 = vld [vmem:[%s7] sm:$0xff]
      %s1376 = scalar_lea.vmem %s7, 8
      %v1377 = vld [vmem:[%s1376] sm:$0xff]
      %vm1378 = vcmask 523264
      %v1380 = vsel %vm1378, %v1355, 0
      %1382 = vmatprep.subr.mxu0 0.0
      %1383 = vmatpush1.msra.mxu0 0.0
      %1384 = vmatprep.subr.mxu0 0.0
      %1385 = vmatpush1.msra.mxu0 0.0
      %1386 = vmatprep.subr.mxu0 0.0
      %1387 = vmatpush1.msra.mxu0 0.0
      %1388 = vmatprep.subr.mxu0 0.0
      %1389 = vmatpush1.msra.mxu0 0.0
      %1390 = vmatprep.subr.mxu0 0.0
      %1391 = vmatpush1.msra.mxu0 0.0
      %1392 = vmatprep.subr.mxu0 0.0
      %1393 = vmatpush1.msra.mxu0 0.0
      %1394 = vmatprep.subr.mxu0 0.0
      %1395 = vmatpush1.msra.mxu0 0.0
      %1396 = vmatprep.subr.mxu0 0.0
      %1397 = vmatpush1.msra.mxu0 0.0
      %1398 = vmatprep.subr.mxu0 0.0
      %1399 = vmatpush1.msra.mxu0 %v1374
      %1400 = vmatprep.subr.mxu0 0.0
      %1401 = vmatpush1.msra.mxu0 %v1373
      %1402 = vmatprep.subr.mxu0 0.0
      %1403 = vmatpush1.msra.mxu0 %v1372
      %1404 = vmatprep.subr.mxu0 0.0
      %1405 = vmatpush1.msra.mxu0 %v1371
      %1406 = vmatprep.subr.mxu0 0.0
      %1407 = vmatpush1.msra.mxu0 %v1370
      %1408 = vmatprep.subr.mxu0 0.0
      %1409 = vmatpush1.msra.mxu0 %v1369
      %1410 = vmatprep.subr.mxu0 0.0
      %1411 = vmatpush1.msra.mxu0 %v1368
      %1412 = vmatprep.subr.mxu0 0.0
      %1413 = vmatpush1.msra.mxu0 %v1367
      %1414 = vmatprep.subr.mxu0 0.0
      %1415 = vmatpush2.msra.mxu0 0.0
      %1416 = vmatprep.subr.mxu0 0.0
      %1417 = vmatpush2.msra.mxu0 0.0
      %1418 = vmatprep.subr.mxu0 0.0
      %1419 = vmatpush2.msra.mxu0 0.0
      %1420 = vmatprep.subr.mxu0 0.0
      %1421 = vmatpush2.msra.mxu0 0.0
      %1422 = vmatprep.subr.mxu0 0.0
      %1423 = vmatpush2.msra.mxu0 0.0
      %1424 = vmatprep.subr.mxu0 0.0
      %1425 = vmatpush2.msra.mxu0 0.0
      %1426 = vmatprep.subr.mxu0 0.0
      %1427 = vmatpush2.msra.mxu0 0.0
      %1428 = vmatprep.subr.mxu0 0.0
      %1429 = vmatpush2.msra.mxu0 0.0
      %1430 = vmatprep.subr.mxu0 0.0
      %1431 = vmatpush2.msra.mxu0 0.0
      %1432 = vmatprep.subr.mxu0 0.0
      %1433 = vmatpush2.msra.mxu0 0.0
      %1434 = vmatprep.subr.mxu0 0.0
      %1435 = vmatpush2.msra.mxu0 0.0
      %1436 = vmatprep.subr.mxu0 0.0
      %1437 = vmatpush2.msra.mxu0 0.0
      %1438 = vmatprep.subr.mxu0 0.0
      %1439 = vmatpush2.msra.mxu0 0.0
      %1440 = vmatprep.subr.mxu0 0.0
      %1441 = vmatpush2.msra.mxu0 0.0
      %1442 = vmatprep.subr.mxu0 0.0
      %1443 = vmatpush2.msra.mxu0 0.0
      %1444 = vmatprep.subr.mxu0 0.0
      %1445 = vmatpush2.msra.mxu0 0.0
      %1446 = vmatprep.mubr.f32.mxu0 0.0
      %1447 = vmatmul.mubr.f32.gmra.mxu0 %v1380
      %v1448 = vpop.f32.mrf.mxu0
      %v1449 = vadd.f32 0.0, %v1448
      %v1450 = vpop.f32.mrf.mxu0
      %1451 = vdwg.mxu0
      %v1453 = vsel %vm1378, %v1354, 0
      %1455 = vmatprep.subr.mxu0 0.0
      %1456 = vmatpush1.msra.mxu0 0.0
      %1457 = vmatprep.subr.mxu0 0.0
      %1458 = vmatpush1.msra.mxu0 0.0
      %1459 = vmatprep.subr.mxu0 0.0
      %1460 = vmatpush1.msra.mxu0 0.0
      %1461 = vmatprep.subr.mxu0 0.0
      %1462 = vmatpush1.msra.mxu0 0.0
      %1463 = vmatprep.subr.mxu0 0.0
      %1464 = vmatpush1.msra.mxu0 0.0
      %1465 = vmatprep.subr.mxu0 0.0
      %1466 = vmatpush1.msra.mxu0 0.0
      %1467 = vmatprep.subr.mxu0 0.0
      %1468 = vmatpush1.msra.mxu0 0.0
      %1469 = vmatprep.subr.mxu0 0.0
      %1470 = vmatpush1.msra.mxu0 0.0
      %1471 = vmatprep.subr.mxu0 0.0
      %1472 = vmatpush1.msra.mxu0 %v1365
      %1473 = vmatprep.subr.mxu0 0.0
      %1474 = vmatpush1.msra.mxu0 %v1364
      %1475 = vmatprep.subr.mxu0 0.0
      %1476 = vmatpush1.msra.mxu0 %v1363
      %1477 = vmatprep.subr.mxu0 0.0
      %1478 = vmatpush1.msra.mxu0 %v1362
      %1479 = vmatprep.subr.mxu0 0.0
      %1480 = vmatpush1.msra.mxu0 %v1361
      %1481 = vmatprep.subr.mxu0 0.0
      %1482 = vmatpush1.msra.mxu0 %v1360
      %1483 = vmatprep.subr.mxu0 0.0
      %1484 = vmatpush1.msra.mxu0 %v1359
      %1485 = vmatprep.subr.mxu0 0.0
      %1486 = vmatpush1.msra.mxu0 %v1358
      %1487 = vmatprep.subr.mxu0 0.0
      %1488 = vmatpush2.msra.mxu0 0.0
      %1489 = vmatprep.subr.mxu0 0.0
      %1490 = vmatpush2.msra.mxu0 0.0
      %1491 = vmatprep.subr.mxu0 0.0
      %1492 = vmatpush2.msra.mxu0 0.0
      %1493 = vmatprep.subr.mxu0 0.0
      %1494 = vmatpush2.msra.mxu0 0.0
      %1495 = vmatprep.subr.mxu0 0.0
      %1496 = vmatpush2.msra.mxu0 0.0
      %1497 = vmatprep.subr.mxu0 0.0
      %1498 = vmatpush2.msra.mxu0 0.0
      %1499 = vmatprep.subr.mxu0 0.0
      %1500 = vmatpush2.msra.mxu0 0.0
      %1501 = vmatprep.subr.mxu0 0.0
      %1502 = vmatpush2.msra.mxu0 0.0
      %1503 = vmatprep.subr.mxu0 0.0
      %1504 = vmatpush2.msra.mxu0 0.0
      %1505 = vmatprep.subr.mxu0 0.0
      %1506 = vmatpush2.msra.mxu0 0.0
      %1507 = vmatprep.subr.mxu0 0.0
      %1508 = vmatpush2.msra.mxu0 0.0
      %1509 = vmatprep.subr.mxu0 0.0
      %1510 = vmatpush2.msra.mxu0 0.0
      %1511 = vmatprep.subr.mxu0 0.0
      %1512 = vmatpush2.msra.mxu0 0.0
      %1513 = vmatprep.subr.mxu0 0.0
      %1514 = vmatpush2.msra.mxu0 0.0
      %1515 = vmatprep.subr.mxu0 0.0
      %1516 = vmatpush2.msra.mxu0 0.0
      %1517 = vmatprep.subr.mxu0 0.0
      %1518 = vmatpush2.msra.mxu0 0.0
      %1519 = vmatprep.mubr.f32.mxu0 0.0
      %1520 = vmatmul.mubr.f32.gmra.mxu0 %v1453
      %v1521 = vpop.f32.mrf.mxu0
      %v1522 = vadd.f32 %v1449, %v1521
      %v1523 = vpop.f32.mrf.mxu0
      %1524 = vdwg.mxu0
      %v1526 = vsel %vm1378, %v1357, 0
      %1528 = vmatprep.subr.mxu0 0.0
      %1529 = vmatpush1.msra.mxu0 0.0
      %1530 = vmatprep.subr.mxu0 0.0
      %1531 = vmatpush1.msra.mxu0 0.0
      %1532 = vmatprep.subr.mxu0 0.0
      %1533 = vmatpush1.msra.mxu0 0.0
      %1534 = vmatprep.subr.mxu0 0.0
      %1535 = vmatpush1.msra.mxu0 0.0
      %1536 = vmatprep.subr.mxu0 0.0
      %1537 = vmatpush1.msra.mxu0 0.0
      %1538 = vmatprep.subr.mxu0 0.0
      %1539 = vmatpush1.msra.mxu0 0.0
      %1540 = vmatprep.subr.mxu0 0.0
      %1541 = vmatpush1.msra.mxu0 0.0
      %1542 = vmatprep.subr.mxu0 0.0
      %1543 = vmatpush1.msra.mxu0 0.0
      %1544 = vmatprep.subr.mxu0 0.0
      %1545 = vmatpush1.msra.mxu0 %v1374
      %1546 = vmatprep.subr.mxu0 0.0
      %1547 = vmatpush1.msra.mxu0 %v1373
      %1548 = vmatprep.subr.mxu0 0.0
      %1549 = vmatpush1.msra.mxu0 %v1372
      %1550 = vmatprep.subr.mxu0 0.0
      %1551 = vmatpush1.msra.mxu0 %v1371
      %1552 = vmatprep.subr.mxu0 0.0
      %1553 = vmatpush1.msra.mxu0 %v1370
      %1554 = vmatprep.subr.mxu0 0.0
      %1555 = vmatpush1.msra.mxu0 %v1369
      %1556 = vmatprep.subr.mxu0 0.0
      %1557 = vmatpush1.msra.mxu0 %v1368
      %1558 = vmatprep.subr.mxu0 0.0
      %1559 = vmatpush1.msra.mxu0 %v1367
      %1560 = vmatprep.subr.mxu0 0.0
      %1561 = vmatpush2.msra.mxu0 0.0
      %1562 = vmatprep.subr.mxu0 0.0
      %1563 = vmatpush2.msra.mxu0 0.0
      %1564 = vmatprep.subr.mxu0 0.0
      %1565 = vmatpush2.msra.mxu0 0.0
      %1566 = vmatprep.subr.mxu0 0.0
      %1567 = vmatpush2.msra.mxu0 0.0
      %1568 = vmatprep.subr.mxu0 0.0
      %1569 = vmatpush2.msra.mxu0 0.0
      %1570 = vmatprep.subr.mxu0 0.0
      %1571 = vmatpush2.msra.mxu0 0.0
      %1572 = vmatprep.subr.mxu0 0.0
      %1573 = vmatpush2.msra.mxu0 0.0
      %1574 = vmatprep.subr.mxu0 0.0
      %1575 = vmatpush2.msra.mxu0 0.0
      %1576 = vmatprep.subr.mxu0 0.0
      %1577 = vmatpush2.msra.mxu0 0.0
      %1578 = vmatprep.subr.mxu0 0.0
      %1579 = vmatpush2.msra.mxu0 0.0
      %1580 = vmatprep.subr.mxu0 0.0
      %1581 = vmatpush2.msra.mxu0 0.0
      %1582 = vmatprep.subr.mxu0 0.0
      %1583 = vmatpush2.msra.mxu0 0.0
      %1584 = vmatprep.subr.mxu0 0.0
      %1585 = vmatpush2.msra.mxu0 0.0
      %1586 = vmatprep.subr.mxu0 0.0
      %1587 = vmatpush2.msra.mxu0 0.0
      %1588 = vmatprep.subr.mxu0 0.0
      %1589 = vmatpush2.msra.mxu0 0.0
      %1590 = vmatprep.subr.mxu0 0.0
      %1591 = vmatpush2.msra.mxu0 0.0
      %1592 = vmatprep.mubr.f32.mxu0 0.0
      %1593 = vmatmul.mubr.f32.gmra.mxu0 %v1526
      %v1594 = vpop.f32.mrf.mxu0
      %v1595 = vadd.f32 0.0, %v1594
      %v1596 = vpop.f32.mrf.mxu0
      %1597 = vdwg.mxu0
      %v1599 = vsel %vm1378, %v1356, 0
      %1601 = vmatprep.subr.mxu0 0.0
      %1602 = vmatpush1.msra.mxu0 0.0
      %1603 = vmatprep.subr.mxu0 0.0
      %1604 = vmatpush1.msra.mxu0 0.0
      %1605 = vmatprep.subr.mxu0 0.0
      %1606 = vmatpush1.msra.mxu0 0.0
      %1607 = vmatprep.subr.mxu0 0.0
      %1608 = vmatpush1.msra.mxu0 0.0
      %1609 = vmatprep.subr.mxu0 0.0
      %1610 = vmatpush1.msra.mxu0 0.0
      %1611 = vmatprep.subr.mxu0 0.0
      %1612 = vmatpush1.msra.mxu0 0.0
      %1613 = vmatprep.subr.mxu0 0.0
      %1614 = vmatpush1.msra.mxu0 0.0
      %1615 = vmatprep.subr.mxu0 0.0
      %1616 = vmatpush1.msra.mxu0 0.0
      %1617 = vmatprep.subr.mxu0 0.0
      %1618 = vmatpush1.msra.mxu0 %v1365
      %1619 = vmatprep.subr.mxu0 0.0
      %1620 = vmatpush1.msra.mxu0 %v1364
      %1621 = vmatprep.subr.mxu0 0.0
      %1622 = vmatpush1.msra.mxu0 %v1363
      %1623 = vmatprep.subr.mxu0 0.0
      %1624 = vmatpush1.msra.mxu0 %v1362
      %1625 = vmatprep.subr.mxu0 0.0
      %1626 = vmatpush1.msra.mxu0 %v1361
      %1627 = vmatprep.subr.mxu0 0.0
      %1628 = vmatpush1.msra.mxu0 %v1360
      %1629 = vmatprep.subr.mxu0 0.0
      %1630 = vmatpush1.msra.mxu0 %v1359
      %1631 = vmatprep.subr.mxu0 0.0
      %1632 = vmatpush1.msra.mxu0 %v1358
      %1633 = vmatprep.subr.mxu0 0.0
      %1634 = vmatpush2.msra.mxu0 0.0
      %1635 = vmatprep.subr.mxu0 0.0
      %1636 = vmatpush2.msra.mxu0 0.0
      %1637 = vmatprep.subr.mxu0 0.0
      %1638 = vmatpush2.msra.mxu0 0.0
      %1639 = vmatprep.subr.mxu0 0.0
      %1640 = vmatpush2.msra.mxu0 0.0
      %1641 = vmatprep.subr.mxu0 0.0
      %1642 = vmatpush2.msra.mxu0 0.0
      %1643 = vmatprep.subr.mxu0 0.0
      %1644 = vmatpush2.msra.mxu0 0.0
      %1645 = vmatprep.subr.mxu0 0.0
      %1646 = vmatpush2.msra.mxu0 0.0
      %1647 = vmatprep.subr.mxu0 0.0
      %1648 = vmatpush2.msra.mxu0 0.0
      %1649 = vmatprep.subr.mxu0 0.0
      %1650 = vmatpush2.msra.mxu0 0.0
      %1651 = vmatprep.subr.mxu0 0.0
      %1652 = vmatpush2.msra.mxu0 0.0
      %1653 = vmatprep.subr.mxu0 0.0
      %1654 = vmatpush2.msra.mxu0 0.0
      %1655 = vmatprep.subr.mxu0 0.0
      %1656 = vmatpush2.msra.mxu0 0.0
      %1657 = vmatprep.subr.mxu0 0.0
      %1658 = vmatpush2.msra.mxu0 0.0
      %1659 = vmatprep.subr.mxu0 0.0
      %1660 = vmatpush2.msra.mxu0 0.0
      %1661 = vmatprep.subr.mxu0 0.0
      %1662 = vmatpush2.msra.mxu0 0.0
      %1663 = vmatprep.subr.mxu0 0.0
      %1664 = vmatpush2.msra.mxu0 0.0
      %1665 = vmatprep.mubr.f32.mxu0 0.0
      %1666 = vmatmul.mubr.f32.gmra.mxu0 %v1599
      %v1667 = vpop.f32.mrf.mxu0
      %v1668 = vadd.f32 %v1595, %v1667
      %v1669 = vpop.f32.mrf.mxu0
      %1670 = vdwg.mxu0
      %vm1671 = vcmask 31744
      %v1673 = vsel %vm1671, %v1377, 0
      %vm1675 = vcmask 1043456
      %v1677 = vsel %vm1675, %v1668, 0
      %1679 = vmatprep.subr.mxu0 0.0
      %1680 = vmatpush1.msra.mxu0 0.0
      %1681 = vmatprep.subr.mxu0 0.0
      %1682 = vmatpush1.msra.mxu0 0.0
      %1683 = vmatprep.subr.mxu0 0.0
      %1684 = vmatpush1.msra.mxu0 0.0
      %1685 = vmatprep.subr.mxu0 0.0
      %1686 = vmatpush1.msra.mxu0 0.0
      %1687 = vmatprep.subr.mxu0 0.0
      %1688 = vmatpush1.msra.mxu0 0.0
      %1689 = vmatprep.subr.mxu0 0.0
      %1690 = vmatpush1.msra.mxu0 0.0
      %1691 = vmatprep.subr.mxu0 0.0
      %1692 = vmatpush1.msra.mxu0 0.0
      %1693 = vmatprep.subr.mxu0 0.0
      %1694 = vmatpush1.msra.mxu0 0.0
      %1695 = vmatprep.subr.mxu0 0.0
      %1696 = vmatpush1.msra.mxu0 0.0
      %1697 = vmatprep.subr.mxu0 0.0
      %1698 = vmatpush1.msra.mxu0 0.0
      %1699 = vmatprep.subr.mxu0 0.0
      %1700 = vmatpush1.msra.mxu0 0.0
      %1701 = vmatprep.subr.mxu0 0.0
      %1702 = vmatpush1.msra.mxu0 0.0
      %1703 = vmatprep.subr.mxu0 0.0
      %1704 = vmatpush1.msra.mxu0 0.0
      %1705 = vmatprep.subr.mxu0 0.0
      %1706 = vmatpush1.msra.mxu0 0.0
      %1707 = vmatprep.subr.mxu0 0.0
      %1708 = vmatpush1.msra.mxu0 0.0
      %1709 = vmatprep.subr.mxu0 0.0
      %1710 = vmatpush1.msra.mxu0 %v1677
      %1711 = vmatprep.subr.mxu0 0.0
      %1712 = vmatpush2.msra.mxu0 0.0
      %1713 = vmatprep.subr.mxu0 0.0
      %1714 = vmatpush2.msra.mxu0 0.0
      %1715 = vmatprep.subr.mxu0 0.0
      %1716 = vmatpush2.msra.mxu0 0.0
      %1717 = vmatprep.subr.mxu0 0.0
      %1718 = vmatpush2.msra.mxu0 0.0
      %1719 = vmatprep.subr.mxu0 0.0
      %1720 = vmatpush2.msra.mxu0 0.0
      %1721 = vmatprep.subr.mxu0 0.0
      %1722 = vmatpush2.msra.mxu0 0.0
      %1723 = vmatprep.subr.mxu0 0.0
      %1724 = vmatpush2.msra.mxu0 0.0
      %1725 = vmatprep.subr.mxu0 0.0
      %1726 = vmatpush2.msra.mxu0 0.0
      %1727 = vmatprep.subr.mxu0 0.0
      %1728 = vmatpush2.msra.mxu0 0.0
      %1729 = vmatprep.subr.mxu0 0.0
      %1730 = vmatpush2.msra.mxu0 0.0
      %1731 = vmatprep.subr.mxu0 0.0
      %1732 = vmatpush2.msra.mxu0 0.0
      %1733 = vmatprep.subr.mxu0 0.0
      %1734 = vmatpush2.msra.mxu0 0.0
      %1735 = vmatprep.subr.mxu0 0.0
      %1736 = vmatpush2.msra.mxu0 0.0
      %1737 = vmatprep.subr.mxu0 0.0
      %1738 = vmatpush2.msra.mxu0 0.0
      %1739 = vmatprep.subr.mxu0 0.0
      %1740 = vmatpush2.msra.mxu0 0.0
      %1741 = vmatprep.subr.mxu0 0.0
      %1742 = vmatpush2.msra.mxu0 0.0
      %1743 = vmatprep.mubr.f32.mxu0 0.0
      %1744 = vmatmul.mubr.f32.gmra.mxu0 %v1673
      %v1745 = vpop.f32.mrf.mxu0
      %v1746 = vadd.f32 0.0, %v1745
      %v1747 = vpop.f32.mrf.mxu0
      %1748 = vdwg.mxu0
      %v1750 = vsel %vm1671, %v1375, 0
      %v1753 = vsel %vm1675, %v1522, 0
      %1755 = vmatprep.subr.mxu0 0.0
      %1756 = vmatpush1.msra.mxu0 0.0
      %1757 = vmatprep.subr.mxu0 0.0
      %1758 = vmatpush1.msra.mxu0 0.0
      %1759 = vmatprep.subr.mxu0 0.0
      %1760 = vmatpush1.msra.mxu0 0.0
      %1761 = vmatprep.subr.mxu0 0.0
      %1762 = vmatpush1.msra.mxu0 0.0
      %1763 = vmatprep.subr.mxu0 0.0
      %1764 = vmatpush1.msra.mxu0 0.0
      %1765 = vmatprep.subr.mxu0 0.0
      %1766 = vmatpush1.msra.mxu0 0.0
      %1767 = vmatprep.subr.mxu0 0.0
      %1768 = vmatpush1.msra.mxu0 0.0
      %1769 = vmatprep.subr.mxu0 0.0
      %1770 = vmatpush1.msra.mxu0 0.0
      %1771 = vmatprep.subr.mxu0 0.0
      %1772 = vmatpush1.msra.mxu0 0.0
      %1773 = vmatprep.subr.mxu0 0.0
      %1774 = vmatpush1.msra.mxu0 0.0
      %1775 = vmatprep.subr.mxu0 0.0
      %1776 = vmatpush1.msra.mxu0 0.0
      %1777 = vmatprep.subr.mxu0 0.0
      %1778 = vmatpush1.msra.mxu0 0.0
      %1779 = vmatprep.subr.mxu0 0.0
      %1780 = vmatpush1.msra.mxu0 0.0
      %1781 = vmatprep.subr.mxu0 0.0
      %1782 = vmatpush1.msra.mxu0 0.0
      %1783 = vmatprep.subr.mxu0 0.0
      %1784 = vmatpush1.msra.mxu0 0.0
      %1785 = vmatprep.subr.mxu0 0.0
      %1786 = vmatpush1.msra.mxu0 %v1753
      %1787 = vmatprep.subr.mxu0 0.0
      %1788 = vmatpush2.msra.mxu0 0.0
      %1789 = vmatprep.subr.mxu0 0.0
      %1790 = vmatpush2.msra.mxu0 0.0
      %1791 = vmatprep.subr.mxu0 0.0
      %1792 = vmatpush2.msra.mxu0 0.0
      %1793 = vmatprep.subr.mxu0 0.0
      %1794 = vmatpush2.msra.mxu0 0.0
      %1795 = vmatprep.subr.mxu0 0.0
      %1796 = vmatpush2.msra.mxu0 0.0
      %1797 = vmatprep.subr.mxu0 0.0
      %1798 = vmatpush2.msra.mxu0 0.0
      %1799 = vmatprep.subr.mxu0 0.0
      %1800 = vmatpush2.msra.mxu0 0.0
      %1801 = vmatprep.subr.mxu0 0.0
      %1802 = vmatpush2.msra.mxu0 0.0
      %1803 = vmatprep.subr.mxu0 0.0
      %1804 = vmatpush2.msra.mxu0 0.0
      %1805 = vmatprep.subr.mxu0 0.0
      %1806 = vmatpush2.msra.mxu0 0.0
      %1807 = vmatprep.subr.mxu0 0.0
      %1808 = vmatpush2.msra.mxu0 0.0
      %1809 = vmatprep.subr.mxu0 0.0
      %1810 = vmatpush2.msra.mxu0 0.0
      %1811 = vmatprep.subr.mxu0 0.0
      %1812 = vmatpush2.msra.mxu0 0.0
      %1813 = vmatprep.subr.mxu0 0.0
      %1814 = vmatpush2.msra.mxu0 0.0
      %1815 = vmatprep.subr.mxu0 0.0
      %1816 = vmatpush2.msra.mxu0 0.0
      %1817 = vmatprep.subr.mxu0 0.0
      %1818 = vmatpush2.msra.mxu0 0.0
      %1819 = vmatprep.mubr.f32.mxu0 0.0
      %1820 = vmatmul.mubr.f32.gmra.mxu0 %v1750
      %v1821 = vpop.f32.mrf.mxu0
      %v1822 = vadd.f32 %v1746, %v1821
      %v1823 = vpop.f32.mrf.mxu0
      %1824 = vdwg.mxu0
      %v1825 = vld [vmem:[%s8] sm:$0xff]
      %v1827 = vsel %vm912, %v1825, 0
      %1829 = vmatprep.subr.mxu0 0.0
      %1830 = vmatpush1.msra.mxu0 0.0
      %1831 = vmatprep.subr.mxu0 0.0
      %1832 = vmatpush1.msra.mxu0 0.0
      %1833 = vmatprep.subr.mxu0 0.0
      %1834 = vmatpush1.msra.mxu0 0.0
      %1835 = vmatprep.subr.mxu0 0.0
      %1836 = vmatpush1.msra.mxu0 0.0
      %1837 = vmatprep.subr.mxu0 0.0
      %1838 = vmatpush1.msra.mxu0 0.0
      %1839 = vmatprep.subr.mxu0 0.0
      %1840 = vmatpush1.msra.mxu0 0.0
      %1841 = vmatprep.subr.mxu0 0.0
      %1842 = vmatpush1.msra.mxu0 0.0
      %1843 = vmatprep.subr.mxu0 0.0
      %1844 = vmatpush1.msra.mxu0 0.0
      %1845 = vmatprep.subr.mxu0 0.0
      %1846 = vmatpush1.msra.mxu0 0.0
      %1847 = vmatprep.subr.mxu0 0.0
      %1848 = vmatpush1.msra.mxu0 0.0
      %1849 = vmatprep.subr.mxu0 0.0
      %1850 = vmatpush1.msra.mxu0 0.0
      %1851 = vmatprep.subr.mxu0 0.0
      %1852 = vmatpush1.msra.mxu0 0.0
      %1853 = vmatprep.subr.mxu0 0.0
      %1854 = vmatpush1.msra.mxu0 0.0
      %1855 = vmatprep.subr.mxu0 0.0
      %1856 = vmatpush1.msra.mxu0 0.0
      %1857 = vmatprep.subr.mxu0 0.0
      %1858 = vmatpush1.msra.mxu0 0.0
      %1859 = vmatprep.subr.mxu0 0.0
      %1860 = vmatpush1.msra.mxu0 %v1822
      %1861 = vmatprep.subr.mxu0 0.0
      %1862 = vmatpush2.msra.mxu0 0.0
      %1863 = vmatprep.subr.mxu0 0.0
      %1864 = vmatpush2.msra.mxu0 0.0
      %1865 = vmatprep.subr.mxu0 0.0
      %1866 = vmatpush2.msra.mxu0 0.0
      %1867 = vmatprep.subr.mxu0 0.0
      %1868 = vmatpush2.msra.mxu0 0.0
      %1869 = vmatprep.subr.mxu0 0.0
      %1870 = vmatpush2.msra.mxu0 0.0
      %1871 = vmatprep.subr.mxu0 0.0
      %1872 = vmatpush2.msra.mxu0 0.0
      %1873 = vmatprep.subr.mxu0 0.0
      %1874 = vmatpush2.msra.mxu0 0.0
      %1875 = vmatprep.subr.mxu0 0.0
      %1876 = vmatpush2.msra.mxu0 0.0
      %1877 = vmatprep.subr.mxu0 0.0
      %1878 = vmatpush2.msra.mxu0 0.0
      %1879 = vmatprep.subr.mxu0 0.0
      %1880 = vmatpush2.msra.mxu0 0.0
      %1881 = vmatprep.subr.mxu0 0.0
      %1882 = vmatpush2.msra.mxu0 0.0
      %1883 = vmatprep.subr.mxu0 0.0
      %1884 = vmatpush2.msra.mxu0 0.0
      %1885 = vmatprep.subr.mxu0 0.0
      %1886 = vmatpush2.msra.mxu0 0.0
      %1887 = vmatprep.subr.mxu0 0.0
      %1888 = vmatpush2.msra.mxu0 0.0
      %1889 = vmatprep.subr.mxu0 0.0
      %1890 = vmatpush2.msra.mxu0 0.0
      %1891 = vmatprep.subr.mxu0 0.0
      %1892 = vmatpush2.msra.mxu0 0.0
      %1893 = vmatprep.mubr.f32.mxu0 0.0
      %1894 = vmatmul.mubr.f32.gmra.mxu0 %v1827
      %v1895 = vpop.f32.mrf.mxu0
      %v1896 = vadd.f32 0.0, %v1895
      %v1897 = vpop.f32.mrf.mxu0
      %1898 = vdwg.mxu0
      %v1899 = vld [vmem:[%s9] sm:$0xff]
      %v1900 = vld [vmem:[%s9 + $0x8] sm:$0xff]
      %v1901 = vld [vmem:[%s9 + $0x10] sm:$0xff]
      %v1902 = vld [vmem:[%s9 + $0x18] sm:$0xff]
      %v1903 = vld [vmem:[%s9 + $0x20] sm:$0xff]
      %v1904 = vld [vmem:[%s9 + $0x28] sm:$0xff]
      %v1905 = vld [vmem:[%s9 + $0x30] sm:$0xff]
      %v1906 = vld [vmem:[%s9 + $0x38] sm:$0xff]
      %v1907 = vld [vmem:[%s9 + $0x40] sm:$0xff]
      %v1908 = vld [vmem:[%s9 + $0x48] sm:$0xff]
      %v1909 = vld [vmem:[%s9 + $0x50] sm:$0xff]
      %v1910 = vld [vmem:[%s9 + $0x58] sm:$0xff]
      %v1911 = vld [vmem:[%s9 + $0x60] sm:$0xff]
      %v1912 = vld [vmem:[%s9 + $0x68] sm:$0xff]
      %v1913 = vld [vmem:[%s9 + $0x70] sm:$0xff]
      %v1914 = vld [vmem:[%s9 + $0x78] sm:$0xff]
      %v1915 = vld [vmem:[%s10] sm:$0xff]
      %v1916 = vld [vmem:[%s10 + $0x8] sm:$0xff]
      %v1917 = vld [vmem:[%s10 + $0x10] sm:$0xff]
      %v1918 = vld [vmem:[%s10 + $0x18] sm:$0xff]
      %v1919 = vld [vmem:[%s10 + $0x20] sm:$0xff]
      %v1920 = vld [vmem:[%s10 + $0x28] sm:$0xff]
      %v1921 = vld [vmem:[%s10 + $0x30] sm:$0xff]
      %v1922 = vld [vmem:[%s10 + $0x38] sm:$0xff]
      %v1923 = vld [vmem:[%s10 + $0x40] sm:$0xff]
      %v1924 = vld [vmem:[%s10 + $0x48] sm:$0xff]
      %v1925 = vld [vmem:[%s10 + $0x50] sm:$0xff]
      %v1926 = vld [vmem:[%s10 + $0x58] sm:$0xff]
      %v1927 = vld [vmem:[%s10 + $0x60] sm:$0xff]
      %v1928 = vld [vmem:[%s10 + $0x68] sm:$0xff]
      %v1929 = vld [vmem:[%s10 + $0x70] sm:$0xff]
      %v1930 = vld [vmem:[%s10 + $0x78] sm:$0xff]
      %1931 = vmatprep.subr.mxu0 0.0
      %1932 = vmatpush1.msra.mxu0 %v1930
      %1933 = vmatprep.subr.mxu0 0.0
      %1934 = vmatpush1.msra.mxu0 %v1929
      %1935 = vmatprep.subr.mxu0 0.0
      %1936 = vmatpush1.msra.mxu0 %v1928
      %1937 = vmatprep.subr.mxu0 0.0
      %1938 = vmatpush1.msra.mxu0 %v1927
      %1939 = vmatprep.subr.mxu0 0.0
      %1940 = vmatpush1.msra.mxu0 %v1926
      %1941 = vmatprep.subr.mxu0 0.0
      %1942 = vmatpush1.msra.mxu0 %v1925
      %1943 = vmatprep.subr.mxu0 0.0
      %1944 = vmatpush1.msra.mxu0 %v1924
      %1945 = vmatprep.subr.mxu0 0.0
      %1946 = vmatpush1.msra.mxu0 %v1923
      %1947 = vmatprep.subr.mxu0 0.0
      %1948 = vmatpush1.msra.mxu0 %v1922
      %1949 = vmatprep.subr.mxu0 0.0
      %1950 = vmatpush1.msra.mxu0 %v1921
      %1951 = vmatprep.subr.mxu0 0.0
      %1952 = vmatpush1.msra.mxu0 %v1920
      %1953 = vmatprep.subr.mxu0 0.0
      %1954 = vmatpush1.msra.mxu0 %v1919
      %1955 = vmatprep.subr.mxu0 0.0
      %1956 = vmatpush1.msra.mxu0 %v1918
      %1957 = vmatprep.subr.mxu0 0.0
      %1958 = vmatpush1.msra.mxu0 %v1917
      %1959 = vmatprep.subr.mxu0 0.0
      %1960 = vmatpush1.msra.mxu0 %v1916
      %1961 = vmatprep.subr.mxu0 0.0
      %1962 = vmatpush1.msra.mxu0 %v1915
      %1963 = vmatprep.subr.mxu0 0.0
      %1964 = vmatpush2.msra.mxu0 0.0
      %1965 = vmatprep.subr.mxu0 0.0
      %1966 = vmatpush2.msra.mxu0 0.0
      %1967 = vmatprep.subr.mxu0 0.0
      %1968 = vmatpush2.msra.mxu0 0.0
      %1969 = vmatprep.subr.mxu0 0.0
      %1970 = vmatpush2.msra.mxu0 0.0
      %1971 = vmatprep.subr.mxu0 0.0
      %1972 = vmatpush2.msra.mxu0 0.0
      %1973 = vmatprep.subr.mxu0 0.0
      %1974 = vmatpush2.msra.mxu0 0.0
      %1975 = vmatprep.subr.mxu0 0.0
      %1976 = vmatpush2.msra.mxu0 0.0
      %1977 = vmatprep.subr.mxu0 0.0
      %1978 = vmatpush2.msra.mxu0 0.0
      %1979 = vmatprep.subr.mxu0 0.0
      %1980 = vmatpush2.msra.mxu0 0.0
      %1981 = vmatprep.subr.mxu0 0.0
      %1982 = vmatpush2.msra.mxu0 0.0
      %1983 = vmatprep.subr.mxu0 0.0
      %1984 = vmatpush2.msra.mxu0 0.0
      %1985 = vmatprep.subr.mxu0 0.0
      %1986 = vmatpush2.msra.mxu0 0.0
      %1987 = vmatprep.subr.mxu0 0.0
      %1988 = vmatpush2.msra.mxu0 0.0
      %1989 = vmatprep.subr.mxu0 0.0
      %1990 = vmatpush2.msra.mxu0 0.0
      %1991 = vmatprep.subr.mxu0 0.0
      %1992 = vmatpush2.msra.mxu0 0.0
      %1993 = vmatprep.subr.mxu0 0.0
      %1994 = vmatpush2.msra.mxu0 0.0
      %1995 = vmatprep.mubr.f32.mxu0 0.0
      %1996 = vmatmul.mubr.f32.gmra.mxu0 %v1896
      %v1997 = vpop.f32.mrf.mxu0
      %v1998 = vadd.f32 0.0, %v1997
      %v1999 = vpop.f32.mrf.mxu0
      %2000 = vdwg.mxu0
      %2001 = vmatprep.subr.mxu0 0.0
      %2002 = vmatpush1.msra.mxu0 %v1914
      %2003 = vmatprep.subr.mxu0 0.0
      %2004 = vmatpush1.msra.mxu0 %v1913
      %2005 = vmatprep.subr.mxu0 0.0
      %2006 = vmatpush1.msra.mxu0 %v1912
      %2007 = vmatprep.subr.mxu0 0.0
      %2008 = vmatpush1.msra.mxu0 %v1911
      %2009 = vmatprep.subr.mxu0 0.0
      %2010 = vmatpush1.msra.mxu0 %v1910
      %2011 = vmatprep.subr.mxu0 0.0
      %2012 = vmatpush1.msra.mxu0 %v1909
      %2013 = vmatprep.subr.mxu0 0.0
      %2014 = vmatpush1.msra.mxu0 %v1908
      %2015 = vmatprep.subr.mxu0 0.0
      %2016 = vmatpush1.msra.mxu0 %v1907
      %2017 = vmatprep.subr.mxu0 0.0
      %2018 = vmatpush1.msra.mxu0 %v1906
      %2019 = vmatprep.subr.mxu0 0.0
      %2020 = vmatpush1.msra.mxu0 %v1905
      %2021 = vmatprep.subr.mxu0 0.0
      %2022 = vmatpush1.msra.mxu0 %v1904
      %2023 = vmatprep.subr.mxu0 0.0
      %2024 = vmatpush1.msra.mxu0 %v1903
      %2025 = vmatprep.subr.mxu0 0.0
      %2026 = vmatpush1.msra.mxu0 %v1902
      %2027 = vmatprep.subr.mxu0 0.0
      %2028 = vmatpush1.msra.mxu0 %v1901
      %2029 = vmatprep.subr.mxu0 0.0
      %2030 = vmatpush1.msra.mxu0 %v1900
      %2031 = vmatprep.subr.mxu0 0.0
      %2032 = vmatpush1.msra.mxu0 %v1899
      %2033 = vmatprep.subr.mxu0 0.0
      %2034 = vmatpush2.msra.mxu0 0.0
      %2035 = vmatprep.subr.mxu0 0.0
      %2036 = vmatpush2.msra.mxu0 0.0
      %2037 = vmatprep.subr.mxu0 0.0
      %2038 = vmatpush2.msra.mxu0 0.0
      %2039 = vmatprep.subr.mxu0 0.0
      %2040 = vmatpush2.msra.mxu0 0.0
      %2041 = vmatprep.subr.mxu0 0.0
      %2042 = vmatpush2.msra.mxu0 0.0
      %2043 = vmatprep.subr.mxu0 0.0
      %2044 = vmatpush2.msra.mxu0 0.0
      %2045 = vmatprep.subr.mxu0 0.0
      %2046 = vmatpush2.msra.mxu0 0.0
      %2047 = vmatprep.subr.mxu0 0.0
      %2048 = vmatpush2.msra.mxu0 0.0
      %2049 = vmatprep.subr.mxu0 0.0
      %2050 = vmatpush2.msra.mxu0 0.0
      %2051 = vmatprep.subr.mxu0 0.0
      %2052 = vmatpush2.msra.mxu0 0.0
      %2053 = vmatprep.subr.mxu0 0.0
      %2054 = vmatpush2.msra.mxu0 0.0
      %2055 = vmatprep.subr.mxu0 0.0
      %2056 = vmatpush2.msra.mxu0 0.0
      %2057 = vmatprep.subr.mxu0 0.0
      %2058 = vmatpush2.msra.mxu0 0.0
      %2059 = vmatprep.subr.mxu0 0.0
      %2060 = vmatpush2.msra.mxu0 0.0
      %2061 = vmatprep.subr.mxu0 0.0
      %2062 = vmatpush2.msra.mxu0 0.0
      %2063 = vmatprep.subr.mxu0 0.0
      %2064 = vmatpush2.msra.mxu0 0.0
      %2065 = vmatprep.mubr.f32.mxu0 0.0
      %2066 = vmatmul.mubr.f32.gmra.mxu0 %v1822
      %v2067 = vpop.f32.mrf.mxu0
      %v2068 = vadd.f32 %v1998, %v2067
      %v2069 = vpop.f32.mrf.mxu0
      %2070 = vdwg.mxu0
      %v2071 = vld [vmem:[%s11] sm:$0x1]
      %v2073 = vlaneseq
      %v2074 = vshrl.u32 %v2073, 7
      %v2075 = vsub.s32 0, %v2074
      %v2076 = vrot.slane %v2071, %v2075
      %v2078 = vadd.f32 %v2068, %v2076
      %v2079 = vmax.f32 %v2078, 0.0
      %vm2080 = vcmask 261120
      %2081 = vst.msk [vmem:[%s411] sm:$0xff] %vm2080, %v2079
      %p2082 = scmp.lt.s32.totalorder %s23, 1
      %s2083 = scalar_select %p2082, %s23, 1
      %s2084 = smul.addr %s2083, 8
      %s2085 = scalar_lea.vmem %s12, %s2084
      // Predicated region
      $region69: #{stacked_conv_autoencoder_forward.1} parent=67 // pred_check
        %p2086 = pneg %p298
      $region70: #{stacked_conv_autoencoder_forward.1} parent=67 // pred_check_branch
        %2088 = sbr.rel (%p2086) target = $region72
      $region71: #{stacked_conv_autoencoder_forward.1} parent=67 // pred_region
        _
      $region72: #{stacked_conv_autoencoder_forward.1} parent=67 // pred_fallthru
        _
    $region68: #{stacked_conv_autoencoder_forward.1} parent=5 // pred_fallthru
      _
    %p2089 = scmp.le.s32.totalorder 2, %s18
    // Predicated region
    $region73: #{stacked_conv_autoencoder_forward.1} parent=5 // pred_check
      %p2090 = pneg %p2089
    $region74: #{stacked_conv_autoencoder_forward.1} parent=5 // pred_check_branch
      %2092 = sbr.rel (%p2090) target = $region76
    $region75: #{stacked_conv_autoencoder_forward.1} parent=5 // pred_region
      %s2093 = ssub.s32 %s18, 2
      // Predicated region
      $region77: #{stacked_conv_autoencoder_forward.1} parent=75 // pred_check
        %p2094 = pneg %p304
      $region78: #{stacked_conv_autoencoder_forward.1} parent=75 // pred_check_branch
        %2096 = sbr.rel (%p2094) target = $region80
      $region79: #{stacked_conv_autoencoder_forward.1} parent=75 // pred_region
        %p2097 = scmp.lt.s32.totalorder %s24, 1
        %s2098 = scalar_select %p2097, %s24, 1
        %s2099 = smul.addr %s2098, 8
        %s2100 = scalar_lea.vmem %s12, %s2099
      $region80: #{stacked_conv_autoencoder_forward.1} parent=75 // pred_fallthru
        _
    $region76: #{stacked_conv_autoencoder_forward.1} parent=5 // pred_fallthru
      _
  $region6: #{stacked_conv_autoencoder_forward.1} parent=0 // loop_footer
    %s22 = sadd.s32 1, %s18
  $region7: #{stacked_conv_autoencoder_forward.1} parent=0 // loop_footer_branch
    %17 = sbr.rel target = $region3
  $region8: #{stacked_conv_autoencoder_forward.1} parent=0 // loop_exit
    _

</llo_original>
